<compile_context>
chip_gen: v7x
topology: tpu7x:2x2x1
jax: 0.10.0
libtpu: 0.0.40
codegen_flags: <defaults>
</compile_context>

<pallas_src>
import jax
import jax.numpy as jnp
from jax import lax
from jax.experimental import pallas as pl
from jax.experimental.pallas import tpu as pltpu

LANE = 128     # lane width; FC output padded to this (lane-dense store)
SUBLANE = 8    # f32 sublane count; batch tile size


def _round_up(v, m):
    return ((v + m - 1) // m) * m


# ----------------------------- fused Pallas kernel -----------------------------

def _fused_convnet_kernel(x_ref, cw_ref, cb_ref, wih_ref, whh_ref, b_ref,
                          h0_ref, c0_ref, fcw_ref, fcb_ref, out_ref,
                          seq_ref, xw_ref):
    # x:     (T, Bt, 2*Cin) bf16   time-major, the two conv taps concatenated on channels
    # cw:    (2*Cin, H) bf16, cb: (1, H) f32
    # wih:   (NL, H, 4H) bf16, whh: (NL, H, 4H) bf16, b: (NL, 1, 4H) f32  (gates i,f,g,o)
    # h0/c0: (NL, Bt, H) f32
    # fcw:   (H, Op) bf16, fcb: (1, Op) f32
    # out:   (Bt, Op) f32
    # scratch: seq_ref (T, Bt, H) bf16, xw_ref (T, Bt, 4H) f32
    T, Bt, Cin2 = x_ref.shape
    H = whh_ref.shape[1]
    NL = wih_ref.shape[0]
    unroll = max(1, min(T, 8))

    # ---- Conv1d(kernel_size=2) + ReLU: single fused matmul, written time-major ----
    xf = x_ref[...].reshape(T * Bt, Cin2)
    y = jnp.dot(xf, cw_ref[...], preferred_element_type=jnp.float32) + cb_ref[...]
    seq_ref[...] = jnp.maximum(y, 0.0).reshape(T, Bt, H).astype(seq_ref.dtype)

    # ---- stacked LSTM; sequences stay in VMEM, h/c stay in vregs ------------------
    h = h0_ref[0]
    c = c0_ref[0]
    for l in range(NL):                                     # static layer loop
        # Hoisted input projection (+ folded bias): one bf16 matmul per layer.
        xw = (jnp.dot(seq_ref[...].reshape(T * Bt, H), wih_ref[l],
                      preferred_element_type=jnp.float32)
              + b_ref[l])
        xw_ref[...] = xw.reshape(T, Bt, 4 * H)
        last_layer = (l == NL - 1)

        def step(t, carry, l=l, last_layer=last_layer):
            h, c = carry
            gates = xw_ref[t] + jnp.dot(h.astype(whh_ref.dtype), whh_ref[l],
                                        preferred_element_type=jnp.float32)
            i = jax.nn.sigmoid(gates[:, 0:H])
            f = jax.nn.sigmoid(gates[:, H:2 * H])
            g = jnp.tanh(gates[:, 2 * H:3 * H])
            o = jax.nn.sigmoid(gates[:, 3 * H:4 * H])
            c = f * c + i * g
            h = o * jnp.tanh(c)
            if not last_layer:                # static: last layer only feeds the FC
                seq_ref[t] = h.astype(seq_ref.dtype)
            return (h, c)

        h, c = lax.fori_loop(0, T, step, (h0_ref[l], c0_ref[l]), unroll=unroll)

    # ---- final Linear on the last timestep's hidden state (lane-dense output) -----
    out_ref[...] = (jnp.dot(h.astype(fcw_ref.dtype), fcw_ref[...],
                            preferred_element_type=jnp.float32)
                    + fcb_ref[...]).astype(out_ref.dtype)


# ----------------------------- padding / packing helpers -----------------------------

def _pack_params(params, H, Op):
    O = params["fc_w"].shape[1]
    cw = jnp.concatenate([params["conv_w0"], params["conv_w1"]], axis=0)   # (2*Cin, Cout)
    Cout = cw.shape[1]
    out = {
        # Conv output columns padded Cout -> H so the conv result shares seq_ref with
        # the layer hidden states; padded columns are exactly 0 (zero weights + bias)
        # and hit zero-padded rows of layer-0 W_ih, so nothing leaks.
        "conv_w": jnp.pad(cw, ((0, 0), (0, H - Cout))).astype(jnp.bfloat16),
        "conv_b": jnp.pad(params["conv_b"], ((0, 0), (0, H - Cout))),
        "fc_w": jnp.pad(params["fc_w"], ((0, 0), (0, Op - O))).astype(jnp.bfloat16),
        "fc_b": jnp.pad(params["fc_b"], ((0, 0), (0, Op - O))),
    }
    wih = []
    for w in params["wih"]:
        din = w.shape[0]
        wih.append(jnp.pad(w, ((0, H - din), (0, 0))))       # layer-0 rows Cout -> H
    out["wih"] = jnp.stack(wih).astype(jnp.bfloat16)          # (NL, H, 4H)
    out["whh"] = jnp.stack(params["whh"]).astype(jnp.bfloat16)  # (NL, H, 4H)
    out["b"] = jnp.stack(params["b"])                          # (NL, 1, 4H) f32
    return out


# ----------------------------- wrapper -----------------------------

@jax.jit
def convnet_forward(params, x, h0, c0):
    # x: (B, seq_length, in_channels) batch-first, same convention as the torch module.
    B, L, Cin = x.shape
    NL, _, H = h0.shape
    Cout = params["conv_w0"].shape[1]
    O = params["fc_w"].shape[1]
    T = L - 1
    assert Cout <= H, "conv output shares the sequence buffer with the hidden states"

    Op = _round_up(O, LANE)
    BTILE = SUBLANE
    Bp = _round_up(B, BTILE)

    p = _pack_params(params, H=H, Op=Op)

    # time-major; both conv taps concatenated on channels; batch padded; bf16 LHS.
    x_tm = jnp.transpose(x, (1, 0, 2))                         # (L, B, Cin)
    x_cat = jnp.concatenate([x_tm[:-1], x_tm[1:]], axis=-1)    # (T, B, 2*Cin)
    x_cat = jnp.pad(x_cat, ((0, 0), (0, Bp - B), (0, 0))).astype(jnp.bfloat16)
    h0p = jnp.pad(h0, ((0, 0), (0, Bp - B), (0, 0)))
    c0p = jnp.pad(c0, ((0, 0), (0, Bp - B), (0, 0)))

    out = pl.pallas_call(
        _fused_convnet_kernel,
        out_shape=jax.ShapeDtypeStruct((Bp, Op), jnp.float32),
        grid=(Bp // BTILE,),
        in_specs=[
            pl.BlockSpec((T, BTILE, 2 * Cin), lambda b: (0, b, 0)),   # x (two taps)
            pl.BlockSpec((2 * Cin, H), lambda b: (0, 0)),             # conv weight
            pl.BlockSpec((1, H), lambda b: (0, 0)),                   # conv bias
            pl.BlockSpec((NL, H, 4 * H), lambda b: (0, 0, 0)),        # W_ih
            pl.BlockSpec((NL, H, 4 * H), lambda b: (0, 0, 0)),        # W_hh
            pl.BlockSpec((NL, 1, 4 * H), lambda b: (0, 0, 0)),        # lstm bias
            pl.BlockSpec((NL, BTILE, H), lambda b: (0, b, 0)),        # h0
            pl.BlockSpec((NL, BTILE, H), lambda b: (0, b, 0)),        # c0
            pl.BlockSpec((H, Op), lambda b: (0, 0)),                  # fc weight
            pl.BlockSpec((1, Op), lambda b: (0, 0)),                  # fc bias
        ],
        out_specs=pl.BlockSpec((BTILE, Op), lambda b: (b, 0)),
        scratch_shapes=[
            pltpu.VMEM((T, BTILE, H), jnp.bfloat16),       # per-layer input/output sequence
            pltpu.VMEM((T, BTILE, 4 * H), jnp.float32),    # hoisted x @ W_ih (+bias)
        ],
        compiler_params=pltpu.CompilerParams(
            dimension_semantics=("parallel",),             # batch tiles -> both TCs on v7x
            vmem_limit_bytes=48 * 1024 * 1024,             # above v5e's 16 MiB default
        ),
    )(x_cat, p["conv_w"], p["conv_b"], p["wih"], p["whh"], p["b"],
      h0p, c0p, p["fc_w"], p["fc_b"])
    return out[:B, :O]


# ----------------------------- params & pure-JAX reference -----------------------------

def init_params(key, in_channels, out_channels, hidden_size, num_layers, output_size):
    def uniform(k, shape, fan):
        bound = 1.0 / jnp.sqrt(jnp.asarray(fan, jnp.float32))
        return jax.random.uniform(k, shape, jnp.float32, -bound, bound)

    keys = iter(jax.random.split(key, 8 + 4 * num_layers))
    params = {}
    # Conv1d(in, out, kernel_size=2): torch weight (out, in, 2) stored as two (in, out) taps.
    fan_conv = in_channels * 2
    params["conv_w0"] = uniform(next(keys), (in_channels, out_channels), fan_conv)
    params["conv_w1"] = uniform(next(keys), (in_channels, out_channels), fan_conv)
    params["conv_b"] = uniform(next(keys), (1, out_channels), fan_conv)

    wih, whh, bs = [], [], []
    for l in range(num_layers):
        din = out_channels if l == 0 else hidden_size
        wih.append(uniform(next(keys), (din, 4 * hidden_size), hidden_size))
        whh.append(uniform(next(keys), (hidden_size, 4 * hidden_size), hidden_size))
        b_ih = uniform(next(keys), (1, 4 * hidden_size), hidden_size)
        b_hh = uniform(next(keys), (1, 4 * hidden_size), hidden_size)
        bs.append(b_ih + b_hh)          # torch adds both biases; fold them.
    params["wih"], params["whh"], params["b"] = wih, whh, bs

    params["fc_w"] = uniform(next(keys), (hidden_size, output_size), hidden_size)
    params["fc_b"] = uniform(next(keys), (1, output_size), hidden_size)
    return params


def reference_forward(params, x, h0, c0):
    y = (jnp.einsum("blc,cd->bld", x[:, :-1, :], params["conv_w0"])
         + jnp.einsum("blc,cd->bld", x[:, 1:, :], params["conv_w1"])
         + params["conv_b"][None])
    inp = jnp.maximum(y, 0.0)           # (B, T, Cout)
    for l in range(len(params["wih"])):
        H = params["whh"][l].shape[0]
        h, c = h0[l], c0[l]
        outs = []
        for t in range(inp.shape[1]):
            gates = (inp[:, t, :] @ params["wih"][l]
                     + h @ params["whh"][l] + params["b"][l])
            i = jax.nn.sigmoid(gates[:, :H])
            f = jax.nn.sigmoid(gates[:, H:2 * H])
            g = jnp.tanh(gates[:, 2 * H:3 * H])
            o = jax.nn.sigmoid(gates[:, 3 * H:4 * H])
            c = f * c + i * g
            h = o * jnp.tanh(c)
            outs.append(h)
        inp = jnp.stack(outs, axis=1)
    return inp[:, -1, :] @ params["fc_w"] + params["fc_b"]


# ----------------------------- main -----------------------------

if __name__ == "__main__":
    # Small shapes consistent with the module's forward (hidden_size matches the spec).
    B, seq_length, in_channels = 2, 8, 4
    out_channels, hidden_size, num_layers, output_size = 8, 64, 2, 1

    key = jax.random.PRNGKey(0)
    kp, kx, kh, kc = jax.random.split(key, 4)

    params = init_params(kp, in_channels, out_channels, hidden_size,
                         num_layers, output_size)
    x = jax.random.normal(kx, (B, seq_length, in_channels), jnp.float32)
    # torch.randn h_0 / c_0 inside forward -> deterministic normals here.
    h0 = jax.random.normal(kh, (num_layers, B, hidden_size), jnp.float32)
    c0 = jax.random.normal(kc, (num_layers, B, hidden_size), jnp.float32)

    pred = convnet_forward(params, x, h0, c0)
    pred = jax.block_until_ready(pred)
    assert pred.shape == (B, output_size), pred.shape

    # Reference is pure f32; kernel uses bf16 matmul operands with f32 accumulation,
    # so allow a bf16-level tolerance.
    ref = reference_forward(params, x, h0, c0)
    if not bool(jnp.allclose(pred, ref, atol=5e-2, rtol=5e-2)):
        raise AssertionError(f"mismatch: pallas={pred} ref={ref}")

    print("KERNEL_OK")
</pallas_src>

<mosaic_0001>
module attributes {stable_mosaic.version = 11 : i64} {
  func.func @_fused_convnet_kernel(%arg0: i32, %arg1: memref<7x8x8xbf16, #tpu.memory_space<vmem>>, %arg2: memref<8x64xbf16, #tpu.memory_space<vmem>>, %arg3: memref<1x64xf32, #tpu.memory_space<vmem>>, %arg4: memref<2x64x256xbf16, #tpu.memory_space<vmem>>, %arg5: memref<2x64x256xbf16, #tpu.memory_space<vmem>>, %arg6: memref<2x1x256xf32, #tpu.memory_space<vmem>>, %arg7: memref<2x8x64xf32, #tpu.memory_space<vmem>>, %arg8: memref<2x8x64xf32, #tpu.memory_space<vmem>>, %arg9: memref<64x128xbf16, #tpu.memory_space<vmem>>, %arg10: memref<1x128xf32, #tpu.memory_space<vmem>>, %arg11: memref<8x128xf32, #tpu.memory_space<vmem>>, %arg12: memref<7x8x64xbf16, #tpu.memory_space<vmem>>, %arg13: memref<7x8x256xf32, #tpu.memory_space<vmem>>) attributes {dimension_semantics = [#tpu.dimension_semantics<parallel>], iteration_bounds = array<i64: 1>, scalar_prefetch = 0 : i64, scratch_operands = 2 : i64, tpu.core_type = #tpu.core_type<tc>, window_params = [{transform_indices = @transform_0, window_bounds = array<i64: 7, 8, 8>}, {pipeline_mode = #tpu.pipeline_mode<synchronous>, transform_indices = @transform_1, window_bounds = array<i64: 8, 64>}, {pipeline_mode = #tpu.pipeline_mode<synchronous>, transform_indices = @transform_2, window_bounds = array<i64: 1, 64>}, {pipeline_mode = #tpu.pipeline_mode<synchronous>, transform_indices = @transform_3, window_bounds = array<i64: 2, 64, 256>}, {pipeline_mode = #tpu.pipeline_mode<synchronous>, transform_indices = @transform_4, window_bounds = array<i64: 2, 64, 256>}, {pipeline_mode = #tpu.pipeline_mode<synchronous>, transform_indices = @transform_5, window_bounds = array<i64: 2, 1, 256>}, {transform_indices = @transform_6, window_bounds = array<i64: 2, 8, 64>}, {transform_indices = @transform_7, window_bounds = array<i64: 2, 8, 64>}, {pipeline_mode = #tpu.pipeline_mode<synchronous>, transform_indices = @transform_8, window_bounds = array<i64: 64, 128>}, {pipeline_mode = #tpu.pipeline_mode<synchronous>, transform_indices = @transform_9, window_bounds = array<i64: 1, 128>}, {transform_indices = @transform_10, window_bounds = array<i64: 8, 128>}]} {
    %c0 = arith.constant 0 : index
    %c0_0 = arith.constant 0 : index
    %c0_1 = arith.constant 0 : index
    %0 = vector.load %arg1[%c0, %c0_0, %c0_1] : memref<7x8x8xbf16, #tpu.memory_space<vmem>>, vector<7x8x8xbf16>
    %1 = vector.shape_cast %0 : vector<7x8x8xbf16> to vector<56x8xbf16>
    %c0_2 = arith.constant 0 : index
    %c0_3 = arith.constant 0 : index
    %2 = vector.load %arg2[%c0_2, %c0_3] : memref<8x64xbf16, #tpu.memory_space<vmem>>, vector<8x64xbf16>
    %cst = arith.constant dense<0.000000e+00> : vector<56x64xf32>
    %3 = tpu.matmul %1, %2, %cst {dimension_numbers = #tpu.dot_dimension_numbers<[1], [0], [0], [1], [0, 0, 1, 1], [], []>} : vector<56x8xbf16>, vector<8x64xbf16>, vector<56x64xf32> -> vector<56x64xf32>
    %c0_4 = arith.constant 0 : index
    %c0_5 = arith.constant 0 : index
    %4 = vector.load %arg3[%c0_4, %c0_5] : memref<1x64xf32, #tpu.memory_space<vmem>>, vector<1x64xf32>
    %5 = vector.broadcast %4 : vector<1x64xf32> to vector<56x64xf32>
    %6 = arith.addf %3, %5 : vector<56x64xf32>
    %cst_6 = arith.constant 0.000000e+00 : f32
    %7 = vector.broadcast %cst_6 : f32 to vector<56x64xf32>
    %8 = arith.maximumf %6, %7 : vector<56x64xf32>
    %9 = vector.shape_cast %8 : vector<56x64xf32> to vector<7x8x64xf32>
    %10 = arith.truncf %9 : vector<7x8x64xf32> to vector<7x8x64xbf16>
    %c0_7 = arith.constant 0 : index
    %c0_8 = arith.constant 0 : index
    %c0_9 = arith.constant 0 : index
    %11 = vector.load %arg12[%c0_7, %c0_8, %c0_9] : memref<7x8x64xbf16, #tpu.memory_space<vmem>>, vector<7x8x64xbf16>
    tpu.vector_store %arg12[%c0_7, %c0_8, %c0_9], %10 {strides = array<i32>} : memref<7x8x64xbf16, #tpu.memory_space<vmem>>, vector<7x8x64xbf16>,
    %c0_10 = arith.constant 0 : index
    %c0_11 = arith.constant 0 : index
    %c0_12 = arith.constant 0 : index
    %12 = vector.load %arg12[%c0_10, %c0_11, %c0_12] : memref<7x8x64xbf16, #tpu.memory_space<vmem>>, vector<7x8x64xbf16>
    %13 = vector.shape_cast %12 : vector<7x8x64xbf16> to vector<56x64xbf16>
    %c0_13 = arith.constant 0 : index
    %c0_14 = arith.constant 0 : index
    %c0_15 = arith.constant 0 : index
    %14 = vector.load %arg4[%c0_13, %c0_14, %c0_15] : memref<2x64x256xbf16, #tpu.memory_space<vmem>>, vector<1x64x256xbf16>
    %15 = vector.shape_cast %14 : vector<1x64x256xbf16> to vector<64x256xbf16>
    %cst_16 = arith.constant dense<0.000000e+00> : vector<56x256xf32>
    %16 = tpu.matmul %13, %15, %cst_16 {dimension_numbers = #tpu.dot_dimension_numbers<[1], [0], [0], [1], [0, 0, 1, 1], [], []>} : vector<56x64xbf16>, vector<64x256xbf16>, vector<56x256xf32> -> vector<56x256xf32>
    %c0_17 = arith.constant 0 : index
    %c0_18 = arith.constant 0 : index
    %c0_19 = arith.constant 0 : index
    %17 = vector.load %arg6[%c0_17, %c0_18, %c0_19] : memref<2x1x256xf32, #tpu.memory_space<vmem>>, vector<1x1x256xf32>
    %18 = vector.shape_cast %17 : vector<1x1x256xf32> to vector<1x256xf32>
    %19 = vector.broadcast %18 : vector<1x256xf32> to vector<56x256xf32>
    %20 = arith.addf %16, %19 : vector<56x256xf32>
    %21 = vector.shape_cast %20 : vector<56x256xf32> to vector<7x8x256xf32>
    %c0_20 = arith.constant 0 : index
    %c0_21 = arith.constant 0 : index
    %c0_22 = arith.constant 0 : index
    %22 = vector.load %arg13[%c0_20, %c0_21, %c0_22] : memref<7x8x256xf32, #tpu.memory_space<vmem>>, vector<7x8x256xf32>
    tpu.vector_store %arg13[%c0_20, %c0_21, %c0_22], %21 {strides = array<i32>} : memref<7x8x256xf32, #tpu.memory_space<vmem>>, vector<7x8x256xf32>,
    %c0_23 = arith.constant 0 : index
    %c0_24 = arith.constant 0 : index
    %c0_25 = arith.constant 0 : index
    %23 = vector.load %arg7[%c0_23, %c0_24, %c0_25] : memref<2x8x64xf32, #tpu.memory_space<vmem>>, vector<1x8x64xf32>
    %24 = vector.shape_cast %23 : vector<1x8x64xf32> to vector<8x64xf32>
    %c0_26 = arith.constant 0 : index
    %c0_27 = arith.constant 0 : index
    %c0_28 = arith.constant 0 : index
    %25 = vector.load %arg8[%c0_26, %c0_27, %c0_28] : memref<2x8x64xf32, #tpu.memory_space<vmem>>, vector<1x8x64xf32>
    %26 = vector.shape_cast %25 : vector<1x8x64xf32> to vector<8x64xf32>
    %c0_i32 = arith.constant 0 : i32
    %27 = arith.index_cast %c0_i32 : i32 to index
    %c0_29 = arith.constant 0 : index
    %c0_30 = arith.constant 0 : index
    %28 = vector.load %arg13[%27, %c0_29, %c0_30] : memref<7x8x256xf32, #tpu.memory_space<vmem>>, vector<1x8x256xf32>
    %29 = vector.shape_cast %28 : vector<1x8x256xf32> to vector<8x256xf32>
    %30 = arith.truncf %24 : vector<8x64xf32> to vector<8x64xbf16>
    %c0_31 = arith.constant 0 : index
    %c0_32 = arith.constant 0 : index
    %c0_33 = arith.constant 0 : index
    %31 = vector.load %arg5[%c0_31, %c0_32, %c0_33] : memref<2x64x256xbf16, #tpu.memory_space<vmem>>, vector<1x64x256xbf16>
    %32 = vector.shape_cast %31 : vector<1x64x256xbf16> to vector<64x256xbf16>
    %cst_34 = arith.constant dense<0.000000e+00> : vector<8x256xf32>
    %33 = tpu.matmul %30, %32, %cst_34 {dimension_numbers = #tpu.dot_dimension_numbers<[1], [0], [0], [1], [0, 0, 1, 1], [], []>} : vector<8x64xbf16>, vector<64x256xbf16>, vector<8x256xf32> -> vector<8x256xf32>
    %34 = arith.addf %29, %33 : vector<8x256xf32>
    %35 = vector.extract_strided_slice %34 {offsets = [0, 0], sizes = [8, 64], strides = [1, 1]} : vector<8x256xf32> to vector<8x64xf32>
    %36 = arith.negf %35 : vector<8x64xf32>
    %37 = math.exp %36 : vector<8x64xf32>
    %cst_35 = arith.constant 1.000000e+00 : f32
    %38 = vector.broadcast %cst_35 : f32 to vector<8x64xf32>
    %39 = arith.addf %38, %37 : vector<8x64xf32>
    %40 = arith.divf %38, %39 : vector<8x64xf32>
    %41 = vector.extract_strided_slice %34 {offsets = [0, 64], sizes = [8, 64], strides = [1, 1]} : vector<8x256xf32> to vector<8x64xf32>
    %42 = arith.negf %41 : vector<8x64xf32>
    %43 = math.exp %42 : vector<8x64xf32>
    %cst_36 = arith.constant 1.000000e+00 : f32
    %44 = vector.broadcast %cst_36 : f32 to vector<8x64xf32>
    %45 = arith.addf %44, %43 : vector<8x64xf32>
    %46 = arith.divf %44, %45 : vector<8x64xf32>
    %47 = vector.extract_strided_slice %34 {offsets = [0, 128], sizes = [8, 64], strides = [1, 1]} : vector<8x256xf32> to vector<8x64xf32>
    %48 = math.tanh %47 : vector<8x64xf32>
    %49 = vector.extract_strided_slice %34 {offsets = [0, 192], sizes = [8, 64], strides = [1, 1]} : vector<8x256xf32> to vector<8x64xf32>
    %50 = arith.negf %49 : vector<8x64xf32>
    %51 = math.exp %50 : vector<8x64xf32>
    %cst_37 = arith.constant 1.000000e+00 : f32
    %52 = vector.broadcast %cst_37 : f32 to vector<8x64xf32>
    %53 = arith.addf %52, %51 : vector<8x64xf32>
    %54 = arith.divf %52, %53 : vector<8x64xf32>
    %55 = arith.mulf %46, %26 : vector<8x64xf32>
    %56 = arith.mulf %40, %48 : vector<8x64xf32>
    %57 = arith.addf %55, %56 : vector<8x64xf32>
    %58 = math.tanh %57 : vector<8x64xf32>
    %59 = arith.mulf %54, %58 : vector<8x64xf32>
    %60 = arith.truncf %59 : vector<8x64xf32> to vector<8x64xbf16>
    %61 = arith.index_cast %c0_i32 : i32 to index
    %c0_38 = arith.constant 0 : index
    %c0_39 = arith.constant 0 : index
    %62 = vector.load %arg12[%61, %c0_38, %c0_39] : memref<7x8x64xbf16, #tpu.memory_space<vmem>>, vector<1x8x64xbf16>
    %63 = vector.shape_cast %62 : vector<1x8x64xbf16> to vector<8x64xbf16>
    %64 = vector.shape_cast %60 : vector<8x64xbf16> to vector<1x8x64xbf16>
    tpu.vector_store %arg12[%61, %c0_38, %c0_39], %64 {strides = array<i32>} : memref<7x8x64xbf16, #tpu.memory_space<vmem>>, vector<1x8x64xbf16>,
    %c1_i32 = arith.constant 1 : i32
    %65 = arith.index_cast %c1_i32 : i32 to index
    %c0_40 = arith.constant 0 : index
    %c0_41 = arith.constant 0 : index
    %66 = vector.load %arg13[%65, %c0_40, %c0_41] : memref<7x8x256xf32, #tpu.memory_space<vmem>>, vector<1x8x256xf32>
    %67 = vector.shape_cast %66 : vector<1x8x256xf32> to vector<8x256xf32>
    %68 = arith.truncf %59 : vector<8x64xf32> to vector<8x64xbf16>
    %c0_42 = arith.constant 0 : index
    %c0_43 = arith.constant 0 : index
    %c0_44 = arith.constant 0 : index
    %69 = vector.load %arg5[%c0_42, %c0_43, %c0_44] : memref<2x64x256xbf16, #tpu.memory_space<vmem>>, vector<1x64x256xbf16>
    %70 = vector.shape_cast %69 : vector<1x64x256xbf16> to vector<64x256xbf16>
    %cst_45 = arith.constant dense<0.000000e+00> : vector<8x256xf32>
    %71 = tpu.matmul %68, %70, %cst_45 {dimension_numbers = #tpu.dot_dimension_numbers<[1], [0], [0], [1], [0, 0, 1, 1], [], []>} : vector<8x64xbf16>, vector<64x256xbf16>, vector<8x256xf32> -> vector<8x256xf32>
    %72 = arith.addf %67, %71 : vector<8x256xf32>
    %73 = vector.extract_strided_slice %72 {offsets = [0, 0], sizes = [8, 64], strides = [1, 1]} : vector<8x256xf32> to vector<8x64xf32>
    %74 = arith.negf %73 : vector<8x64xf32>
    %75 = math.exp %74 : vector<8x64xf32>
    %cst_46 = arith.constant 1.000000e+00 : f32
    %76 = vector.broadcast %cst_46 : f32 to vector<8x64xf32>
    %77 = arith.addf %76, %75 : vector<8x64xf32>
    %78 = arith.divf %76, %77 : vector<8x64xf32>
    %79 = vector.extract_strided_slice %72 {offsets = [0, 64], sizes = [8, 64], strides = [1, 1]} : vector<8x256xf32> to vector<8x64xf32>
    %80 = arith.negf %79 : vector<8x64xf32>
    %81 = math.exp %80 : vector<8x64xf32>
    %cst_47 = arith.constant 1.000000e+00 : f32
    %82 = vector.broadcast %cst_47 : f32 to vector<8x64xf32>
    %83 = arith.addf %82, %81 : vector<8x64xf32>
    %84 = arith.divf %82, %83 : vector<8x64xf32>
    %85 = vector.extract_strided_slice %72 {offsets = [0, 128], sizes = [8, 64], strides = [1, 1]} : vector<8x256xf32> to vector<8x64xf32>
    %86 = math.tanh %85 : vector<8x64xf32>
    %87 = vector.extract_strided_slice %72 {offsets = [0, 192], sizes = [8, 64], strides = [1, 1]} : vector<8x256xf32> to vector<8x64xf32>
    %88 = arith.negf %87 : vector<8x64xf32>
    %89 = math.exp %88 : vector<8x64xf32>
    %cst_48 = arith.constant 1.000000e+00 : f32
    %90 = vector.broadcast %cst_48 : f32 to vector<8x64xf32>
    %91 = arith.addf %90, %89 : vector<8x64xf32>
    %92 = arith.divf %90, %91 : vector<8x64xf32>
    %93 = arith.mulf %84, %57 : vector<8x64xf32>
    %94 = arith.mulf %78, %86 : vector<8x64xf32>
    %95 = arith.addf %93, %94 : vector<8x64xf32>
    %96 = math.tanh %95 : vector<8x64xf32>
    %97 = arith.mulf %92, %96 : vector<8x64xf32>
    %98 = arith.truncf %97 : vector<8x64xf32> to vector<8x64xbf16>
    %99 = arith.index_cast %c1_i32 : i32 to index
    %c0_49 = arith.constant 0 : index
    %c0_50 = arith.constant 0 : index
    %100 = vector.load %arg12[%99, %c0_49, %c0_50] : memref<7x8x64xbf16, #tpu.memory_space<vmem>>, vector<1x8x64xbf16>
    %101 = vector.shape_cast %100 : vector<1x8x64xbf16> to vector<8x64xbf16>
    %102 = vector.shape_cast %98 : vector<8x64xbf16> to vector<1x8x64xbf16>
    tpu.vector_store %arg12[%99, %c0_49, %c0_50], %102 {strides = array<i32>} : memref<7x8x64xbf16, #tpu.memory_space<vmem>>, vector<1x8x64xbf16>,
    %c2_i32 = arith.constant 2 : i32
    %103 = arith.index_cast %c2_i32 : i32 to index
    %c0_51 = arith.constant 0 : index
    %c0_52 = arith.constant 0 : index
    %104 = vector.load %arg13[%103, %c0_51, %c0_52] : memref<7x8x256xf32, #tpu.memory_space<vmem>>, vector<1x8x256xf32>
    %105 = vector.shape_cast %104 : vector<1x8x256xf32> to vector<8x256xf32>
    %106 = arith.truncf %97 : vector<8x64xf32> to vector<8x64xbf16>
    %c0_53 = arith.constant 0 : index
    %c0_54 = arith.constant 0 : index
    %c0_55 = arith.constant 0 : index
    %107 = vector.load %arg5[%c0_53, %c0_54, %c0_55] : memref<2x64x256xbf16, #tpu.memory_space<vmem>>, vector<1x64x256xbf16>
    %108 = vector.shape_cast %107 : vector<1x64x256xbf16> to vector<64x256xbf16>
    %cst_56 = arith.constant dense<0.000000e+00> : vector<8x256xf32>
    %109 = tpu.matmul %106, %108, %cst_56 {dimension_numbers = #tpu.dot_dimension_numbers<[1], [0], [0], [1], [0, 0, 1, 1], [], []>} : vector<8x64xbf16>, vector<64x256xbf16>, vector<8x256xf32> -> vector<8x256xf32>
    %110 = arith.addf %105, %109 : vector<8x256xf32>
    %111 = vector.extract_strided_slice %110 {offsets = [0, 0], sizes = [8, 64], strides = [1, 1]} : vector<8x256xf32> to vector<8x64xf32>
    %112 = arith.negf %111 : vector<8x64xf32>
    %113 = math.exp %112 : vector<8x64xf32>
    %cst_57 = arith.constant 1.000000e+00 : f32
    %114 = vector.broadcast %cst_57 : f32 to vector<8x64xf32>
    %115 = arith.addf %114, %113 : vector<8x64xf32>
    %116 = arith.divf %114, %115 : vector<8x64xf32>
    %117 = vector.extract_strided_slice %110 {offsets = [0, 64], sizes = [8, 64], strides = [1, 1]} : vector<8x256xf32> to vector<8x64xf32>
    %118 = arith.negf %117 : vector<8x64xf32>
    %119 = math.exp %118 : vector<8x64xf32>
    %cst_58 = arith.constant 1.000000e+00 : f32
    %120 = vector.broadcast %cst_58 : f32 to vector<8x64xf32>
    %121 = arith.addf %120, %119 : vector<8x64xf32>
    %122 = arith.divf %120, %121 : vector<8x64xf32>
    %123 = vector.extract_strided_slice %110 {offsets = [0, 128], sizes = [8, 64], strides = [1, 1]} : vector<8x256xf32> to vector<8x64xf32>
    %124 = math.tanh %123 : vector<8x64xf32>
    %125 = vector.extract_strided_slice %110 {offsets = [0, 192], sizes = [8, 64], strides = [1, 1]} : vector<8x256xf32> to vector<8x64xf32>
    %126 = arith.negf %125 : vector<8x64xf32>
    %127 = math.exp %126 : vector<8x64xf32>
    %cst_59 = arith.constant 1.000000e+00 : f32
    %128 = vector.broadcast %cst_59 : f32 to vector<8x64xf32>
    %129 = arith.addf %128, %127 : vector<8x64xf32>
    %130 = arith.divf %128, %129 : vector<8x64xf32>
    %131 = arith.mulf %122, %95 : vector<8x64xf32>
    %132 = arith.mulf %116, %124 : vector<8x64xf32>
    %133 = arith.addf %131, %132 : vector<8x64xf32>
    %134 = math.tanh %133 : vector<8x64xf32>
    %135 = arith.mulf %130, %134 : vector<8x64xf32>
    %136 = arith.truncf %135 : vector<8x64xf32> to vector<8x64xbf16>
    %137 = arith.index_cast %c2_i32 : i32 to index
    %c0_60 = arith.constant 0 : index
    %c0_61 = arith.constant 0 : index
    %138 = vector.load %arg12[%137, %c0_60, %c0_61] : memref<7x8x64xbf16, #tpu.memory_space<vmem>>, vector<1x8x64xbf16>
    %139 = vector.shape_cast %138 : vector<1x8x64xbf16> to vector<8x64xbf16>
    %140 = vector.shape_cast %136 : vector<8x64xbf16> to vector<1x8x64xbf16>
    tpu.vector_store %arg12[%137, %c0_60, %c0_61], %140 {strides = array<i32>} : memref<7x8x64xbf16, #tpu.memory_space<vmem>>, vector<1x8x64xbf16>,
    %c3_i32 = arith.constant 3 : i32
    %141 = arith.index_cast %c3_i32 : i32 to index
    %c0_62 = arith.constant 0 : index
    %c0_63 = arith.constant 0 : index
    %142 = vector.load %arg13[%141, %c0_62, %c0_63] : memref<7x8x256xf32, #tpu.memory_space<vmem>>, vector<1x8x256xf32>
    %143 = vector.shape_cast %142 : vector<1x8x256xf32> to vector<8x256xf32>
    %144 = arith.truncf %135 : vector<8x64xf32> to vector<8x64xbf16>
    %c0_64 = arith.constant 0 : index
    %c0_65 = arith.constant 0 : index
    %c0_66 = arith.constant 0 : index
    %145 = vector.load %arg5[%c0_64, %c0_65, %c0_66] : memref<2x64x256xbf16, #tpu.memory_space<vmem>>, vector<1x64x256xbf16>
    %146 = vector.shape_cast %145 : vector<1x64x256xbf16> to vector<64x256xbf16>
    %cst_67 = arith.constant dense<0.000000e+00> : vector<8x256xf32>
    %147 = tpu.matmul %144, %146, %cst_67 {dimension_numbers = #tpu.dot_dimension_numbers<[1], [0], [0], [1], [0, 0, 1, 1], [], []>} : vector<8x64xbf16>, vector<64x256xbf16>, vector<8x256xf32> -> vector<8x256xf32>
    %148 = arith.addf %143, %147 : vector<8x256xf32>
    %149 = vector.extract_strided_slice %148 {offsets = [0, 0], sizes = [8, 64], strides = [1, 1]} : vector<8x256xf32> to vector<8x64xf32>
    %150 = arith.negf %149 : vector<8x64xf32>
    %151 = math.exp %150 : vector<8x64xf32>
    %cst_68 = arith.constant 1.000000e+00 : f32
    %152 = vector.broadcast %cst_68 : f32 to vector<8x64xf32>
    %153 = arith.addf %152, %151 : vector<8x64xf32>
    %154 = arith.divf %152, %153 : vector<8x64xf32>
    %155 = vector.extract_strided_slice %148 {offsets = [0, 64], sizes = [8, 64], strides = [1, 1]} : vector<8x256xf32> to vector<8x64xf32>
    %156 = arith.negf %155 : vector<8x64xf32>
    %157 = math.exp %156 : vector<8x64xf32>
    %cst_69 = arith.constant 1.000000e+00 : f32
    %158 = vector.broadcast %cst_69 : f32 to vector<8x64xf32>
    %159 = arith.addf %158, %157 : vector<8x64xf32>
    %160 = arith.divf %158, %159 : vector<8x64xf32>
    %161 = vector.extract_strided_slice %148 {offsets = [0, 128], sizes = [8, 64], strides = [1, 1]} : vector<8x256xf32> to vector<8x64xf32>
    %162 = math.tanh %161 : vector<8x64xf32>
    %163 = vector.extract_strided_slice %148 {offsets = [0, 192], sizes = [8, 64], strides = [1, 1]} : vector<8x256xf32> to vector<8x64xf32>
    %164 = arith.negf %163 : vector<8x64xf32>
    %165 = math.exp %164 : vector<8x64xf32>
    %cst_70 = arith.constant 1.000000e+00 : f32
    %166 = vector.broadcast %cst_70 : f32 to vector<8x64xf32>
    %167 = arith.addf %166, %165 : vector<8x64xf32>
    %168 = arith.divf %166, %167 : vector<8x64xf32>
    %169 = arith.mulf %160, %133 : vector<8x64xf32>
    %170 = arith.mulf %154, %162 : vector<8x64xf32>
    %171 = arith.addf %169, %170 : vector<8x64xf32>
    %172 = math.tanh %171 : vector<8x64xf32>
    %173 = arith.mulf %168, %172 : vector<8x64xf32>
    %174 = arith.truncf %173 : vector<8x64xf32> to vector<8x64xbf16>
    %175 = arith.index_cast %c3_i32 : i32 to index
    %c0_71 = arith.constant 0 : index
    %c0_72 = arith.constant 0 : index
    %176 = vector.load %arg12[%175, %c0_71, %c0_72] : memref<7x8x64xbf16, #tpu.memory_space<vmem>>, vector<1x8x64xbf16>
    %177 = vector.shape_cast %176 : vector<1x8x64xbf16> to vector<8x64xbf16>
    %178 = vector.shape_cast %174 : vector<8x64xbf16> to vector<1x8x64xbf16>
    tpu.vector_store %arg12[%175, %c0_71, %c0_72], %178 {strides = array<i32>} : memref<7x8x64xbf16, #tpu.memory_space<vmem>>, vector<1x8x64xbf16>,
    %c4_i32 = arith.constant 4 : i32
    %179 = arith.index_cast %c4_i32 : i32 to index
    %c0_73 = arith.constant 0 : index
    %c0_74 = arith.constant 0 : index
    %180 = vector.load %arg13[%179, %c0_73, %c0_74] : memref<7x8x256xf32, #tpu.memory_space<vmem>>, vector<1x8x256xf32>
    %181 = vector.shape_cast %180 : vector<1x8x256xf32> to vector<8x256xf32>
    %182 = arith.truncf %173 : vector<8x64xf32> to vector<8x64xbf16>
    %c0_75 = arith.constant 0 : index
    %c0_76 = arith.constant 0 : index
    %c0_77 = arith.constant 0 : index
    %183 = vector.load %arg5[%c0_75, %c0_76, %c0_77] : memref<2x64x256xbf16, #tpu.memory_space<vmem>>, vector<1x64x256xbf16>
    %184 = vector.shape_cast %183 : vector<1x64x256xbf16> to vector<64x256xbf16>
    %cst_78 = arith.constant dense<0.000000e+00> : vector<8x256xf32>
    %185 = tpu.matmul %182, %184, %cst_78 {dimension_numbers = #tpu.dot_dimension_numbers<[1], [0], [0], [1], [0, 0, 1, 1], [], []>} : vector<8x64xbf16>, vector<64x256xbf16>, vector<8x256xf32> -> vector<8x256xf32>
    %186 = arith.addf %181, %185 : vector<8x256xf32>
    %187 = vector.extract_strided_slice %186 {offsets = [0, 0], sizes = [8, 64], strides = [1, 1]} : vector<8x256xf32> to vector<8x64xf32>
    %188 = arith.negf %187 : vector<8x64xf32>
    %189 = math.exp %188 : vector<8x64xf32>
    %cst_79 = arith.constant 1.000000e+00 : f32
    %190 = vector.broadcast %cst_79 : f32 to vector<8x64xf32>
    %191 = arith.addf %190, %189 : vector<8x64xf32>
    %192 = arith.divf %190, %191 : vector<8x64xf32>
    %193 = vector.extract_strided_slice %186 {offsets = [0, 64], sizes = [8, 64], strides = [1, 1]} : vector<8x256xf32> to vector<8x64xf32>
    %194 = arith.negf %193 : vector<8x64xf32>
    %195 = math.exp %194 : vector<8x64xf32>
    %cst_80 = arith.constant 1.000000e+00 : f32
    %196 = vector.broadcast %cst_80 : f32 to vector<8x64xf32>
    %197 = arith.addf %196, %195 : vector<8x64xf32>
    %198 = arith.divf %196, %197 : vector<8x64xf32>
    %199 = vector.extract_strided_slice %186 {offsets = [0, 128], sizes = [8, 64], strides = [1, 1]} : vector<8x256xf32> to vector<8x64xf32>
    %200 = math.tanh %199 : vector<8x64xf32>
    %201 = vector.extract_strided_slice %186 {offsets = [0, 192], sizes = [8, 64], strides = [1, 1]} : vector<8x256xf32> to vector<8x64xf32>
    %202 = arith.negf %201 : vector<8x64xf32>
    %203 = math.exp %202 : vector<8x64xf32>
    %cst_81 = arith.constant 1.000000e+00 : f32
    %204 = vector.broadcast %cst_81 : f32 to vector<8x64xf32>
    %205 = arith.addf %204, %203 : vector<8x64xf32>
    %206 = arith.divf %204, %205 : vector<8x64xf32>
    %207 = arith.mulf %198, %171 : vector<8x64xf32>
    %208 = arith.mulf %192, %200 : vector<8x64xf32>
    %209 = arith.addf %207, %208 : vector<8x64xf32>
    %210 = math.tanh %209 : vector<8x64xf32>
    %211 = arith.mulf %206, %210 : vector<8x64xf32>
    %212 = arith.truncf %211 : vector<8x64xf32> to vector<8x64xbf16>
    %213 = arith.index_cast %c4_i32 : i32 to index
    %c0_82 = arith.constant 0 : index
    %c0_83 = arith.constant 0 : index
    %214 = vector.load %arg12[%213, %c0_82, %c0_83] : memref<7x8x64xbf16, #tpu.memory_space<vmem>>, vector<1x8x64xbf16>
    %215 = vector.shape_cast %214 : vector<1x8x64xbf16> to vector<8x64xbf16>
    %216 = vector.shape_cast %212 : vector<8x64xbf16> to vector<1x8x64xbf16>
    tpu.vector_store %arg12[%213, %c0_82, %c0_83], %216 {strides = array<i32>} : memref<7x8x64xbf16, #tpu.memory_space<vmem>>, vector<1x8x64xbf16>,
    %c5_i32 = arith.constant 5 : i32
    %217 = arith.index_cast %c5_i32 : i32 to index
    %c0_84 = arith.constant 0 : index
    %c0_85 = arith.constant 0 : index
    %218 = vector.load %arg13[%217, %c0_84, %c0_85] : memref<7x8x256xf32, #tpu.memory_space<vmem>>, vector<1x8x256xf32>
    %219 = vector.shape_cast %218 : vector<1x8x256xf32> to vector<8x256xf32>
    %220 = arith.truncf %211 : vector<8x64xf32> to vector<8x64xbf16>
    %c0_86 = arith.constant 0 : index
    %c0_87 = arith.constant 0 : index
    %c0_88 = arith.constant 0 : index
    %221 = vector.load %arg5[%c0_86, %c0_87, %c0_88] : memref<2x64x256xbf16, #tpu.memory_space<vmem>>, vector<1x64x256xbf16>
    %222 = vector.shape_cast %221 : vector<1x64x256xbf16> to vector<64x256xbf16>
    %cst_89 = arith.constant dense<0.000000e+00> : vector<8x256xf32>
    %223 = tpu.matmul %220, %222, %cst_89 {dimension_numbers = #tpu.dot_dimension_numbers<[1], [0], [0], [1], [0, 0, 1, 1], [], []>} : vector<8x64xbf16>, vector<64x256xbf16>, vector<8x256xf32> -> vector<8x256xf32>
    %224 = arith.addf %219, %223 : vector<8x256xf32>
    %225 = vector.extract_strided_slice %224 {offsets = [0, 0], sizes = [8, 64], strides = [1, 1]} : vector<8x256xf32> to vector<8x64xf32>
    %226 = arith.negf %225 : vector<8x64xf32>
    %227 = math.exp %226 : vector<8x64xf32>
    %cst_90 = arith.constant 1.000000e+00 : f32
    %228 = vector.broadcast %cst_90 : f32 to vector<8x64xf32>
    %229 = arith.addf %228, %227 : vector<8x64xf32>
    %230 = arith.divf %228, %229 : vector<8x64xf32>
    %231 = vector.extract_strided_slice %224 {offsets = [0, 64], sizes = [8, 64], strides = [1, 1]} : vector<8x256xf32> to vector<8x64xf32>
    %232 = arith.negf %231 : vector<8x64xf32>
    %233 = math.exp %232 : vector<8x64xf32>
    %cst_91 = arith.constant 1.000000e+00 : f32
    %234 = vector.broadcast %cst_91 : f32 to vector<8x64xf32>
    %235 = arith.addf %234, %233 : vector<8x64xf32>
    %236 = arith.divf %234, %235 : vector<8x64xf32>
    %237 = vector.extract_strided_slice %224 {offsets = [0, 128], sizes = [8, 64], strides = [1, 1]} : vector<8x256xf32> to vector<8x64xf32>
    %238 = math.tanh %237 : vector<8x64xf32>
    %239 = vector.extract_strided_slice %224 {offsets = [0, 192], sizes = [8, 64], strides = [1, 1]} : vector<8x256xf32> to vector<8x64xf32>
    %240 = arith.negf %239 : vector<8x64xf32>
    %241 = math.exp %240 : vector<8x64xf32>
    %cst_92 = arith.constant 1.000000e+00 : f32
    %242 = vector.broadcast %cst_92 : f32 to vector<8x64xf32>
    %243 = arith.addf %242, %241 : vector<8x64xf32>
    %244 = arith.divf %242, %243 : vector<8x64xf32>
    %245 = arith.mulf %236, %209 : vector<8x64xf32>
    %246 = arith.mulf %230, %238 : vector<8x64xf32>
    %247 = arith.addf %245, %246 : vector<8x64xf32>
    %248 = math.tanh %247 : vector<8x64xf32>
    %249 = arith.mulf %244, %248 : vector<8x64xf32>
    %250 = arith.truncf %249 : vector<8x64xf32> to vector<8x64xbf16>
    %251 = arith.index_cast %c5_i32 : i32 to index
    %c0_93 = arith.constant 0 : index
    %c0_94 = arith.constant 0 : index
    %252 = vector.load %arg12[%251, %c0_93, %c0_94] : memref<7x8x64xbf16, #tpu.memory_space<vmem>>, vector<1x8x64xbf16>
    %253 = vector.shape_cast %252 : vector<1x8x64xbf16> to vector<8x64xbf16>
    %254 = vector.shape_cast %250 : vector<8x64xbf16> to vector<1x8x64xbf16>
    tpu.vector_store %arg12[%251, %c0_93, %c0_94], %254 {strides = array<i32>} : memref<7x8x64xbf16, #tpu.memory_space<vmem>>, vector<1x8x64xbf16>,
    %c6_i32 = arith.constant 6 : i32
    %255 = arith.index_cast %c6_i32 : i32 to index
    %c0_95 = arith.constant 0 : index
    %c0_96 = arith.constant 0 : index
    %256 = vector.load %arg13[%255, %c0_95, %c0_96] : memref<7x8x256xf32, #tpu.memory_space<vmem>>, vector<1x8x256xf32>
    %257 = vector.shape_cast %256 : vector<1x8x256xf32> to vector<8x256xf32>
    %258 = arith.truncf %249 : vector<8x64xf32> to vector<8x64xbf16>
    %c0_97 = arith.constant 0 : index
    %c0_98 = arith.constant 0 : index
    %c0_99 = arith.constant 0 : index
    %259 = vector.load %arg5[%c0_97, %c0_98, %c0_99] : memref<2x64x256xbf16, #tpu.memory_space<vmem>>, vector<1x64x256xbf16>
    %260 = vector.shape_cast %259 : vector<1x64x256xbf16> to vector<64x256xbf16>
    %cst_100 = arith.constant dense<0.000000e+00> : vector<8x256xf32>
    %261 = tpu.matmul %258, %260, %cst_100 {dimension_numbers = #tpu.dot_dimension_numbers<[1], [0], [0], [1], [0, 0, 1, 1], [], []>} : vector<8x64xbf16>, vector<64x256xbf16>, vector<8x256xf32> -> vector<8x256xf32>
    %262 = arith.addf %257, %261 : vector<8x256xf32>
    %263 = vector.extract_strided_slice %262 {offsets = [0, 0], sizes = [8, 64], strides = [1, 1]} : vector<8x256xf32> to vector<8x64xf32>
    %264 = arith.negf %263 : vector<8x64xf32>
    %265 = math.exp %264 : vector<8x64xf32>
    %cst_101 = arith.constant 1.000000e+00 : f32
    %266 = vector.broadcast %cst_101 : f32 to vector<8x64xf32>
    %267 = arith.addf %266, %265 : vector<8x64xf32>
    %268 = arith.divf %266, %267 : vector<8x64xf32>
    %269 = vector.extract_strided_slice %262 {offsets = [0, 64], sizes = [8, 64], strides = [1, 1]} : vector<8x256xf32> to vector<8x64xf32>
    %270 = arith.negf %269 : vector<8x64xf32>
    %271 = math.exp %270 : vector<8x64xf32>
    %cst_102 = arith.constant 1.000000e+00 : f32
    %272 = vector.broadcast %cst_102 : f32 to vector<8x64xf32>
    %273 = arith.addf %272, %271 : vector<8x64xf32>
    %274 = arith.divf %272, %273 : vector<8x64xf32>
    %275 = vector.extract_strided_slice %262 {offsets = [0, 128], sizes = [8, 64], strides = [1, 1]} : vector<8x256xf32> to vector<8x64xf32>
    %276 = math.tanh %275 : vector<8x64xf32>
    %277 = vector.extract_strided_slice %262 {offsets = [0, 192], sizes = [8, 64], strides = [1, 1]} : vector<8x256xf32> to vector<8x64xf32>
    %278 = arith.negf %277 : vector<8x64xf32>
    %279 = math.exp %278 : vector<8x64xf32>
    %cst_103 = arith.constant 1.000000e+00 : f32
    %280 = vector.broadcast %cst_103 : f32 to vector<8x64xf32>
    %281 = arith.addf %280, %279 : vector<8x64xf32>
    %282 = arith.divf %280, %281 : vector<8x64xf32>
    %283 = arith.mulf %274, %247 : vector<8x64xf32>
    %284 = arith.mulf %268, %276 : vector<8x64xf32>
    %285 = arith.addf %283, %284 : vector<8x64xf32>
    %286 = math.tanh %285 : vector<8x64xf32>
    %287 = arith.mulf %282, %286 : vector<8x64xf32>
    %288 = arith.truncf %287 : vector<8x64xf32> to vector<8x64xbf16>
    %289 = arith.index_cast %c6_i32 : i32 to index
    %c0_104 = arith.constant 0 : index
    %c0_105 = arith.constant 0 : index
    %290 = vector.load %arg12[%289, %c0_104, %c0_105] : memref<7x8x64xbf16, #tpu.memory_space<vmem>>, vector<1x8x64xbf16>
    %291 = vector.shape_cast %290 : vector<1x8x64xbf16> to vector<8x64xbf16>
    %292 = vector.shape_cast %288 : vector<8x64xbf16> to vector<1x8x64xbf16>
    tpu.vector_store %arg12[%289, %c0_104, %c0_105], %292 {strides = array<i32>} : memref<7x8x64xbf16, #tpu.memory_space<vmem>>, vector<1x8x64xbf16>,
    %c7_i32 = arith.constant 7 : i32
    %c0_106 = arith.constant 0 : index
    %c0_107 = arith.constant 0 : index
    %c0_108 = arith.constant 0 : index
    %293 = vector.load %arg12[%c0_106, %c0_107, %c0_108] : memref<7x8x64xbf16, #tpu.memory_space<vmem>>, vector<7x8x64xbf16>
    %294 = vector.shape_cast %293 : vector<7x8x64xbf16> to vector<56x64xbf16>
    %c1 = arith.constant 1 : index
    %c0_109 = arith.constant 0 : index
    %c0_110 = arith.constant 0 : index
    %295 = vector.load %arg4[%c1, %c0_109, %c0_110] : memref<2x64x256xbf16, #tpu.memory_space<vmem>>, vector<1x64x256xbf16>
    %296 = vector.shape_cast %295 : vector<1x64x256xbf16> to vector<64x256xbf16>
    %cst_111 = arith.constant dense<0.000000e+00> : vector<56x256xf32>
    %297 = tpu.matmul %294, %296, %cst_111 {dimension_numbers = #tpu.dot_dimension_numbers<[1], [0], [0], [1], [0, 0, 1, 1], [], []>} : vector<56x64xbf16>, vector<64x256xbf16>, vector<56x256xf32> -> vector<56x256xf32>
    %c1_112 = arith.constant 1 : index
    %c0_113 = arith.constant 0 : index
    %c0_114 = arith.constant 0 : index
    %298 = vector.load %arg6[%c1_112, %c0_113, %c0_114] : memref<2x1x256xf32, #tpu.memory_space<vmem>>, vector<1x1x256xf32>
    %299 = vector.shape_cast %298 : vector<1x1x256xf32> to vector<1x256xf32>
    %300 = vector.broadcast %299 : vector<1x256xf32> to vector<56x256xf32>
    %301 = arith.addf %297, %300 : vector<56x256xf32>
    %302 = vector.shape_cast %301 : vector<56x256xf32> to vector<7x8x256xf32>
    %c0_115 = arith.constant 0 : index
    %c0_116 = arith.constant 0 : index
    %c0_117 = arith.constant 0 : index
    %303 = vector.load %arg13[%c0_115, %c0_116, %c0_117] : memref<7x8x256xf32, #tpu.memory_space<vmem>>, vector<7x8x256xf32>
    tpu.vector_store %arg13[%c0_115, %c0_116, %c0_117], %302 {strides = array<i32>} : memref<7x8x256xf32, #tpu.memory_space<vmem>>, vector<7x8x256xf32>,
    %c1_118 = arith.constant 1 : index
    %c0_119 = arith.constant 0 : index
    %c0_120 = arith.constant 0 : index
    %304 = vector.load %arg7[%c1_118, %c0_119, %c0_120] : memref<2x8x64xf32, #tpu.memory_space<vmem>>, vector<1x8x64xf32>
    %305 = vector.shape_cast %304 : vector<1x8x64xf32> to vector<8x64xf32>
    %c1_121 = arith.constant 1 : index
    %c0_122 = arith.constant 0 : index
    %c0_123 = arith.constant 0 : index
    %306 = vector.load %arg8[%c1_121, %c0_122, %c0_123] : memref<2x8x64xf32, #tpu.memory_space<vmem>>, vector<1x8x64xf32>
    %307 = vector.shape_cast %306 : vector<1x8x64xf32> to vector<8x64xf32>
    %c0_i32_124 = arith.constant 0 : i32
    %308 = arith.index_cast %c0_i32_124 : i32 to index
    %c0_125 = arith.constant 0 : index
    %c0_126 = arith.constant 0 : index
    %309 = vector.load %arg13[%308, %c0_125, %c0_126] : memref<7x8x256xf32, #tpu.memory_space<vmem>>, vector<1x8x256xf32>
    %310 = vector.shape_cast %309 : vector<1x8x256xf32> to vector<8x256xf32>
    %311 = arith.truncf %305 : vector<8x64xf32> to vector<8x64xbf16>
    %c1_127 = arith.constant 1 : index
    %c0_128 = arith.constant 0 : index
    %c0_129 = arith.constant 0 : index
    %312 = vector.load %arg5[%c1_127, %c0_128, %c0_129] : memref<2x64x256xbf16, #tpu.memory_space<vmem>>, vector<1x64x256xbf16>
    %313 = vector.shape_cast %312 : vector<1x64x256xbf16> to vector<64x256xbf16>
    %cst_130 = arith.constant dense<0.000000e+00> : vector<8x256xf32>
    %314 = tpu.matmul %311, %313, %cst_130 {dimension_numbers = #tpu.dot_dimension_numbers<[1], [0], [0], [1], [0, 0, 1, 1], [], []>} : vector<8x64xbf16>, vector<64x256xbf16>, vector<8x256xf32> -> vector<8x256xf32>
    %315 = arith.addf %310, %314 : vector<8x256xf32>
    %316 = vector.extract_strided_slice %315 {offsets = [0, 0], sizes = [8, 64], strides = [1, 1]} : vector<8x256xf32> to vector<8x64xf32>
    %317 = arith.negf %316 : vector<8x64xf32>
    %318 = math.exp %317 : vector<8x64xf32>
    %cst_131 = arith.constant 1.000000e+00 : f32
    %319 = vector.broadcast %cst_131 : f32 to vector<8x64xf32>
    %320 = arith.addf %319, %318 : vector<8x64xf32>
    %321 = arith.divf %319, %320 : vector<8x64xf32>
    %322 = vector.extract_strided_slice %315 {offsets = [0, 64], sizes = [8, 64], strides = [1, 1]} : vector<8x256xf32> to vector<8x64xf32>
    %323 = arith.negf %322 : vector<8x64xf32>
    %324 = math.exp %323 : vector<8x64xf32>
    %cst_132 = arith.constant 1.000000e+00 : f32
    %325 = vector.broadcast %cst_132 : f32 to vector<8x64xf32>
    %326 = arith.addf %325, %324 : vector<8x64xf32>
    %327 = arith.divf %325, %326 : vector<8x64xf32>
    %328 = vector.extract_strided_slice %315 {offsets = [0, 128], sizes = [8, 64], strides = [1, 1]} : vector<8x256xf32> to vector<8x64xf32>
    %329 = math.tanh %328 : vector<8x64xf32>
    %330 = vector.extract_strided_slice %315 {offsets = [0, 192], sizes = [8, 64], strides = [1, 1]} : vector<8x256xf32> to vector<8x64xf32>
    %331 = arith.negf %330 : vector<8x64xf32>
    %332 = math.exp %331 : vector<8x64xf32>
    %cst_133 = arith.constant 1.000000e+00 : f32
    %333 = vector.broadcast %cst_133 : f32 to vector<8x64xf32>
    %334 = arith.addf %333, %332 : vector<8x64xf32>
    %335 = arith.divf %333, %334 : vector<8x64xf32>
    %336 = arith.mulf %327, %307 : vector<8x64xf32>
    %337 = arith.mulf %321, %329 : vector<8x64xf32>
    %338 = arith.addf %336, %337 : vector<8x64xf32>
    %339 = math.tanh %338 : vector<8x64xf32>
    %340 = arith.mulf %335, %339 : vector<8x64xf32>
    %c1_i32_134 = arith.constant 1 : i32
    %341 = arith.index_cast %c1_i32_134 : i32 to index
    %c0_135 = arith.constant 0 : index
    %c0_136 = arith.constant 0 : index
    %342 = vector.load %arg13[%341, %c0_135, %c0_136] : memref<7x8x256xf32, #tpu.memory_space<vmem>>, vector<1x8x256xf32>
    %343 = vector.shape_cast %342 : vector<1x8x256xf32> to vector<8x256xf32>
    %344 = arith.truncf %340 : vector<8x64xf32> to vector<8x64xbf16>
    %c1_137 = arith.constant 1 : index
    %c0_138 = arith.constant 0 : index
    %c0_139 = arith.constant 0 : index
    %345 = vector.load %arg5[%c1_137, %c0_138, %c0_139] : memref<2x64x256xbf16, #tpu.memory_space<vmem>>, vector<1x64x256xbf16>
    %346 = vector.shape_cast %345 : vector<1x64x256xbf16> to vector<64x256xbf16>
    %cst_140 = arith.constant dense<0.000000e+00> : vector<8x256xf32>
    %347 = tpu.matmul %344, %346, %cst_140 {dimension_numbers = #tpu.dot_dimension_numbers<[1], [0], [0], [1], [0, 0, 1, 1], [], []>} : vector<8x64xbf16>, vector<64x256xbf16>, vector<8x256xf32> -> vector<8x256xf32>
    %348 = arith.addf %343, %347 : vector<8x256xf32>
    %349 = vector.extract_strided_slice %348 {offsets = [0, 0], sizes = [8, 64], strides = [1, 1]} : vector<8x256xf32> to vector<8x64xf32>
    %350 = arith.negf %349 : vector<8x64xf32>
    %351 = math.exp %350 : vector<8x64xf32>
    %cst_141 = arith.constant 1.000000e+00 : f32
    %352 = vector.broadcast %cst_141 : f32 to vector<8x64xf32>
    %353 = arith.addf %352, %351 : vector<8x64xf32>
    %354 = arith.divf %352, %353 : vector<8x64xf32>
    %355 = vector.extract_strided_slice %348 {offsets = [0, 64], sizes = [8, 64], strides = [1, 1]} : vector<8x256xf32> to vector<8x64xf32>
    %356 = arith.negf %355 : vector<8x64xf32>
    %357 = math.exp %356 : vector<8x64xf32>
    %cst_142 = arith.constant 1.000000e+00 : f32
    %358 = vector.broadcast %cst_142 : f32 to vector<8x64xf32>
    %359 = arith.addf %358, %357 : vector<8x64xf32>
    %360 = arith.divf %358, %359 : vector<8x64xf32>
    %361 = vector.extract_strided_slice %348 {offsets = [0, 128], sizes = [8, 64], strides = [1, 1]} : vector<8x256xf32> to vector<8x64xf32>
    %362 = math.tanh %361 : vector<8x64xf32>
    %363 = vector.extract_strided_slice %348 {offsets = [0, 192], sizes = [8, 64], strides = [1, 1]} : vector<8x256xf32> to vector<8x64xf32>
    %364 = arith.negf %363 : vector<8x64xf32>
    %365 = math.exp %364 : vector<8x64xf32>
    %cst_143 = arith.constant 1.000000e+00 : f32
    %366 = vector.broadcast %cst_143 : f32 to vector<8x64xf32>
    %367 = arith.addf %366, %365 : vector<8x64xf32>
    %368 = arith.divf %366, %367 : vector<8x64xf32>
    %369 = arith.mulf %360, %338 : vector<8x64xf32>
    %370 = arith.mulf %354, %362 : vector<8x64xf32>
    %371 = arith.addf %369, %370 : vector<8x64xf32>
    %372 = math.tanh %371 : vector<8x64xf32>
    %373 = arith.mulf %368, %372 : vector<8x64xf32>
    %c2_i32_144 = arith.constant 2 : i32
    %374 = arith.index_cast %c2_i32_144 : i32 to index
    %c0_145 = arith.constant 0 : index
    %c0_146 = arith.constant 0 : index
    %375 = vector.load %arg13[%374, %c0_145, %c0_146] : memref<7x8x256xf32, #tpu.memory_space<vmem>>, vector<1x8x256xf32>
    %376 = vector.shape_cast %375 : vector<1x8x256xf32> to vector<8x256xf32>
    %377 = arith.truncf %373 : vector<8x64xf32> to vector<8x64xbf16>
    %c1_147 = arith.constant 1 : index
    %c0_148 = arith.constant 0 : index
    %c0_149 = arith.constant 0 : index
    %378 = vector.load %arg5[%c1_147, %c0_148, %c0_149] : memref<2x64x256xbf16, #tpu.memory_space<vmem>>, vector<1x64x256xbf16>
    %379 = vector.shape_cast %378 : vector<1x64x256xbf16> to vector<64x256xbf16>
    %cst_150 = arith.constant dense<0.000000e+00> : vector<8x256xf32>
    %380 = tpu.matmul %377, %379, %cst_150 {dimension_numbers = #tpu.dot_dimension_numbers<[1], [0], [0], [1], [0, 0, 1, 1], [], []>} : vector<8x64xbf16>, vector<64x256xbf16>, vector<8x256xf32> -> vector<8x256xf32>
    %381 = arith.addf %376, %380 : vector<8x256xf32>
    %382 = vector.extract_strided_slice %381 {offsets = [0, 0], sizes = [8, 64], strides = [1, 1]} : vector<8x256xf32> to vector<8x64xf32>
    %383 = arith.negf %382 : vector<8x64xf32>
    %384 = math.exp %383 : vector<8x64xf32>
    %cst_151 = arith.constant 1.000000e+00 : f32
    %385 = vector.broadcast %cst_151 : f32 to vector<8x64xf32>
    %386 = arith.addf %385, %384 : vector<8x64xf32>
    %387 = arith.divf %385, %386 : vector<8x64xf32>
    %388 = vector.extract_strided_slice %381 {offsets = [0, 64], sizes = [8, 64], strides = [1, 1]} : vector<8x256xf32> to vector<8x64xf32>
    %389 = arith.negf %388 : vector<8x64xf32>
    %390 = math.exp %389 : vector<8x64xf32>
    %cst_152 = arith.constant 1.000000e+00 : f32
    %391 = vector.broadcast %cst_152 : f32 to vector<8x64xf32>
    %392 = arith.addf %391, %390 : vector<8x64xf32>
    %393 = arith.divf %391, %392 : vector<8x64xf32>
    %394 = vector.extract_strided_slice %381 {offsets = [0, 128], sizes = [8, 64], strides = [1, 1]} : vector<8x256xf32> to vector<8x64xf32>
    %395 = math.tanh %394 : vector<8x64xf32>
    %396 = vector.extract_strided_slice %381 {offsets = [0, 192], sizes = [8, 64], strides = [1, 1]} : vector<8x256xf32> to vector<8x64xf32>
    %397 = arith.negf %396 : vector<8x64xf32>
    %398 = math.exp %397 : vector<8x64xf32>
    %cst_153 = arith.constant 1.000000e+00 : f32
    %399 = vector.broadcast %cst_153 : f32 to vector<8x64xf32>
    %400 = arith.addf %399, %398 : vector<8x64xf32>
    %401 = arith.divf %399, %400 : vector<8x64xf32>
    %402 = arith.mulf %393, %371 : vector<8x64xf32>
    %403 = arith.mulf %387, %395 : vector<8x64xf32>
    %404 = arith.addf %402, %403 : vector<8x64xf32>
    %405 = math.tanh %404 : vector<8x64xf32>
    %406 = arith.mulf %401, %405 : vector<8x64xf32>
    %c3_i32_154 = arith.constant 3 : i32
    %407 = arith.index_cast %c3_i32_154 : i32 to index
    %c0_155 = arith.constant 0 : index
    %c0_156 = arith.constant 0 : index
    %408 = vector.load %arg13[%407, %c0_155, %c0_156] : memref<7x8x256xf32, #tpu.memory_space<vmem>>, vector<1x8x256xf32>
    %409 = vector.shape_cast %408 : vector<1x8x256xf32> to vector<8x256xf32>
    %410 = arith.truncf %406 : vector<8x64xf32> to vector<8x64xbf16>
    %c1_157 = arith.constant 1 : index
    %c0_158 = arith.constant 0 : index
    %c0_159 = arith.constant 0 : index
    %411 = vector.load %arg5[%c1_157, %c0_158, %c0_159] : memref<2x64x256xbf16, #tpu.memory_space<vmem>>, vector<1x64x256xbf16>
    %412 = vector.shape_cast %411 : vector<1x64x256xbf16> to vector<64x256xbf16>
    %cst_160 = arith.constant dense<0.000000e+00> : vector<8x256xf32>
    %413 = tpu.matmul %410, %412, %cst_160 {dimension_numbers = #tpu.dot_dimension_numbers<[1], [0], [0], [1], [0, 0, 1, 1], [], []>} : vector<8x64xbf16>, vector<64x256xbf16>, vector<8x256xf32> -> vector<8x256xf32>
    %414 = arith.addf %409, %413 : vector<8x256xf32>
    %415 = vector.extract_strided_slice %414 {offsets = [0, 0], sizes = [8, 64], strides = [1, 1]} : vector<8x256xf32> to vector<8x64xf32>
    %416 = arith.negf %415 : vector<8x64xf32>
    %417 = math.exp %416 : vector<8x64xf32>
    %cst_161 = arith.constant 1.000000e+00 : f32
    %418 = vector.broadcast %cst_161 : f32 to vector<8x64xf32>
    %419 = arith.addf %418, %417 : vector<8x64xf32>
    %420 = arith.divf %418, %419 : vector<8x64xf32>
    %421 = vector.extract_strided_slice %414 {offsets = [0, 64], sizes = [8, 64], strides = [1, 1]} : vector<8x256xf32> to vector<8x64xf32>
    %422 = arith.negf %421 : vector<8x64xf32>
    %423 = math.exp %422 : vector<8x64xf32>
    %cst_162 = arith.constant 1.000000e+00 : f32
    %424 = vector.broadcast %cst_162 : f32 to vector<8x64xf32>
    %425 = arith.addf %424, %423 : vector<8x64xf32>
    %426 = arith.divf %424, %425 : vector<8x64xf32>
    %427 = vector.extract_strided_slice %414 {offsets = [0, 128], sizes = [8, 64], strides = [1, 1]} : vector<8x256xf32> to vector<8x64xf32>
    %428 = math.tanh %427 : vector<8x64xf32>
    %429 = vector.extract_strided_slice %414 {offsets = [0, 192], sizes = [8, 64], strides = [1, 1]} : vector<8x256xf32> to vector<8x64xf32>
    %430 = arith.negf %429 : vector<8x64xf32>
    %431 = math.exp %430 : vector<8x64xf32>
    %cst_163 = arith.constant 1.000000e+00 : f32
    %432 = vector.broadcast %cst_163 : f32 to vector<8x64xf32>
    %433 = arith.addf %432, %431 : vector<8x64xf32>
    %434 = arith.divf %432, %433 : vector<8x64xf32>
    %435 = arith.mulf %426, %404 : vector<8x64xf32>
    %436 = arith.mulf %420, %428 : vector<8x64xf32>
    %437 = arith.addf %435, %436 : vector<8x64xf32>
    %438 = math.tanh %437 : vector<8x64xf32>
    %439 = arith.mulf %434, %438 : vector<8x64xf32>
    %c4_i32_164 = arith.constant 4 : i32
    %440 = arith.index_cast %c4_i32_164 : i32 to index
    %c0_165 = arith.constant 0 : index
    %c0_166 = arith.constant 0 : index
    %441 = vector.load %arg13[%440, %c0_165, %c0_166] : memref<7x8x256xf32, #tpu.memory_space<vmem>>, vector<1x8x256xf32>
    %442 = vector.shape_cast %441 : vector<1x8x256xf32> to vector<8x256xf32>
    %443 = arith.truncf %439 : vector<8x64xf32> to vector<8x64xbf16>
    %c1_167 = arith.constant 1 : index
    %c0_168 = arith.constant 0 : index
    %c0_169 = arith.constant 0 : index
    %444 = vector.load %arg5[%c1_167, %c0_168, %c0_169] : memref<2x64x256xbf16, #tpu.memory_space<vmem>>, vector<1x64x256xbf16>
    %445 = vector.shape_cast %444 : vector<1x64x256xbf16> to vector<64x256xbf16>
    %cst_170 = arith.constant dense<0.000000e+00> : vector<8x256xf32>
    %446 = tpu.matmul %443, %445, %cst_170 {dimension_numbers = #tpu.dot_dimension_numbers<[1], [0], [0], [1], [0, 0, 1, 1], [], []>} : vector<8x64xbf16>, vector<64x256xbf16>, vector<8x256xf32> -> vector<8x256xf32>
    %447 = arith.addf %442, %446 : vector<8x256xf32>
    %448 = vector.extract_strided_slice %447 {offsets = [0, 0], sizes = [8, 64], strides = [1, 1]} : vector<8x256xf32> to vector<8x64xf32>
    %449 = arith.negf %448 : vector<8x64xf32>
    %450 = math.exp %449 : vector<8x64xf32>
    %cst_171 = arith.constant 1.000000e+00 : f32
    %451 = vector.broadcast %cst_171 : f32 to vector<8x64xf32>
    %452 = arith.addf %451, %450 : vector<8x64xf32>
    %453 = arith.divf %451, %452 : vector<8x64xf32>
    %454 = vector.extract_strided_slice %447 {offsets = [0, 64], sizes = [8, 64], strides = [1, 1]} : vector<8x256xf32> to vector<8x64xf32>
    %455 = arith.negf %454 : vector<8x64xf32>
    %456 = math.exp %455 : vector<8x64xf32>
    %cst_172 = arith.constant 1.000000e+00 : f32
    %457 = vector.broadcast %cst_172 : f32 to vector<8x64xf32>
    %458 = arith.addf %457, %456 : vector<8x64xf32>
    %459 = arith.divf %457, %458 : vector<8x64xf32>
    %460 = vector.extract_strided_slice %447 {offsets = [0, 128], sizes = [8, 64], strides = [1, 1]} : vector<8x256xf32> to vector<8x64xf32>
    %461 = math.tanh %460 : vector<8x64xf32>
    %462 = vector.extract_strided_slice %447 {offsets = [0, 192], sizes = [8, 64], strides = [1, 1]} : vector<8x256xf32> to vector<8x64xf32>
    %463 = arith.negf %462 : vector<8x64xf32>
    %464 = math.exp %463 : vector<8x64xf32>
    %cst_173 = arith.constant 1.000000e+00 : f32
    %465 = vector.broadcast %cst_173 : f32 to vector<8x64xf32>
    %466 = arith.addf %465, %464 : vector<8x64xf32>
    %467 = arith.divf %465, %466 : vector<8x64xf32>
    %468 = arith.mulf %459, %437 : vector<8x64xf32>
    %469 = arith.mulf %453, %461 : vector<8x64xf32>
    %470 = arith.addf %468, %469 : vector<8x64xf32>
    %471 = math.tanh %470 : vector<8x64xf32>
    %472 = arith.mulf %467, %471 : vector<8x64xf32>
    %c5_i32_174 = arith.constant 5 : i32
    %473 = arith.index_cast %c5_i32_174 : i32 to index
    %c0_175 = arith.constant 0 : index
    %c0_176 = arith.constant 0 : index
    %474 = vector.load %arg13[%473, %c0_175, %c0_176] : memref<7x8x256xf32, #tpu.memory_space<vmem>>, vector<1x8x256xf32>
    %475 = vector.shape_cast %474 : vector<1x8x256xf32> to vector<8x256xf32>
    %476 = arith.truncf %472 : vector<8x64xf32> to vector<8x64xbf16>
    %c1_177 = arith.constant 1 : index
    %c0_178 = arith.constant 0 : index
    %c0_179 = arith.constant 0 : index
    %477 = vector.load %arg5[%c1_177, %c0_178, %c0_179] : memref<2x64x256xbf16, #tpu.memory_space<vmem>>, vector<1x64x256xbf16>
    %478 = vector.shape_cast %477 : vector<1x64x256xbf16> to vector<64x256xbf16>
    %cst_180 = arith.constant dense<0.000000e+00> : vector<8x256xf32>
    %479 = tpu.matmul %476, %478, %cst_180 {dimension_numbers = #tpu.dot_dimension_numbers<[1], [0], [0], [1], [0, 0, 1, 1], [], []>} : vector<8x64xbf16>, vector<64x256xbf16>, vector<8x256xf32> -> vector<8x256xf32>
    %480 = arith.addf %475, %479 : vector<8x256xf32>
    %481 = vector.extract_strided_slice %480 {offsets = [0, 0], sizes = [8, 64], strides = [1, 1]} : vector<8x256xf32> to vector<8x64xf32>
    %482 = arith.negf %481 : vector<8x64xf32>
    %483 = math.exp %482 : vector<8x64xf32>
    %cst_181 = arith.constant 1.000000e+00 : f32
    %484 = vector.broadcast %cst_181 : f32 to vector<8x64xf32>
    %485 = arith.addf %484, %483 : vector<8x64xf32>
    %486 = arith.divf %484, %485 : vector<8x64xf32>
    %487 = vector.extract_strided_slice %480 {offsets = [0, 64], sizes = [8, 64], strides = [1, 1]} : vector<8x256xf32> to vector<8x64xf32>
    %488 = arith.negf %487 : vector<8x64xf32>
    %489 = math.exp %488 : vector<8x64xf32>
    %cst_182 = arith.constant 1.000000e+00 : f32
    %490 = vector.broadcast %cst_182 : f32 to vector<8x64xf32>
    %491 = arith.addf %490, %489 : vector<8x64xf32>
    %492 = arith.divf %490, %491 : vector<8x64xf32>
    %493 = vector.extract_strided_slice %480 {offsets = [0, 128], sizes = [8, 64], strides = [1, 1]} : vector<8x256xf32> to vector<8x64xf32>
    %494 = math.tanh %493 : vector<8x64xf32>
    %495 = vector.extract_strided_slice %480 {offsets = [0, 192], sizes = [8, 64], strides = [1, 1]} : vector<8x256xf32> to vector<8x64xf32>
    %496 = arith.negf %495 : vector<8x64xf32>
    %497 = math.exp %496 : vector<8x64xf32>
    %cst_183 = arith.constant 1.000000e+00 : f32
    %498 = vector.broadcast %cst_183 : f32 to vector<8x64xf32>
    %499 = arith.addf %498, %497 : vector<8x64xf32>
    %500 = arith.divf %498, %499 : vector<8x64xf32>
    %501 = arith.mulf %492, %470 : vector<8x64xf32>
    %502 = arith.mulf %486, %494 : vector<8x64xf32>
    %503 = arith.addf %501, %502 : vector<8x64xf32>
    %504 = math.tanh %503 : vector<8x64xf32>
    %505 = arith.mulf %500, %504 : vector<8x64xf32>
    %c6_i32_184 = arith.constant 6 : i32
    %506 = arith.index_cast %c6_i32_184 : i32 to index
    %c0_185 = arith.constant 0 : index
    %c0_186 = arith.constant 0 : index
    %507 = vector.load %arg13[%506, %c0_185, %c0_186] : memref<7x8x256xf32, #tpu.memory_space<vmem>>, vector<1x8x256xf32>
    %508 = vector.shape_cast %507 : vector<1x8x256xf32> to vector<8x256xf32>
    %509 = arith.truncf %505 : vector<8x64xf32> to vector<8x64xbf16>
    %c1_187 = arith.constant 1 : index
    %c0_188 = arith.constant 0 : index
    %c0_189 = arith.constant 0 : index
    %510 = vector.load %arg5[%c1_187, %c0_188, %c0_189] : memref<2x64x256xbf16, #tpu.memory_space<vmem>>, vector<1x64x256xbf16>
    %511 = vector.shape_cast %510 : vector<1x64x256xbf16> to vector<64x256xbf16>
    %cst_190 = arith.constant dense<0.000000e+00> : vector<8x256xf32>
    %512 = tpu.matmul %509, %511, %cst_190 {dimension_numbers = #tpu.dot_dimension_numbers<[1], [0], [0], [1], [0, 0, 1, 1], [], []>} : vector<8x64xbf16>, vector<64x256xbf16>, vector<8x256xf32> -> vector<8x256xf32>
    %513 = arith.addf %508, %512 : vector<8x256xf32>
    %514 = vector.extract_strided_slice %513 {offsets = [0, 0], sizes = [8, 64], strides = [1, 1]} : vector<8x256xf32> to vector<8x64xf32>
    %515 = arith.negf %514 : vector<8x64xf32>
    %516 = math.exp %515 : vector<8x64xf32>
    %cst_191 = arith.constant 1.000000e+00 : f32
    %517 = vector.broadcast %cst_191 : f32 to vector<8x64xf32>
    %518 = arith.addf %517, %516 : vector<8x64xf32>
    %519 = arith.divf %517, %518 : vector<8x64xf32>
    %520 = vector.extract_strided_slice %513 {offsets = [0, 64], sizes = [8, 64], strides = [1, 1]} : vector<8x256xf32> to vector<8x64xf32>
    %521 = arith.negf %520 : vector<8x64xf32>
    %522 = math.exp %521 : vector<8x64xf32>
    %cst_192 = arith.constant 1.000000e+00 : f32
    %523 = vector.broadcast %cst_192 : f32 to vector<8x64xf32>
    %524 = arith.addf %523, %522 : vector<8x64xf32>
    %525 = arith.divf %523, %524 : vector<8x64xf32>
    %526 = vector.extract_strided_slice %513 {offsets = [0, 128], sizes = [8, 64], strides = [1, 1]} : vector<8x256xf32> to vector<8x64xf32>
    %527 = math.tanh %526 : vector<8x64xf32>
    %528 = vector.extract_strided_slice %513 {offsets = [0, 192], sizes = [8, 64], strides = [1, 1]} : vector<8x256xf32> to vector<8x64xf32>
    %529 = arith.negf %528 : vector<8x64xf32>
    %530 = math.exp %529 : vector<8x64xf32>
    %cst_193 = arith.constant 1.000000e+00 : f32
    %531 = vector.broadcast %cst_193 : f32 to vector<8x64xf32>
    %532 = arith.addf %531, %530 : vector<8x64xf32>
    %533 = arith.divf %531, %532 : vector<8x64xf32>
    %534 = arith.mulf %525, %503 : vector<8x64xf32>
    %535 = arith.mulf %519, %527 : vector<8x64xf32>
    %536 = arith.addf %534, %535 : vector<8x64xf32>
    %537 = math.tanh %536 : vector<8x64xf32>
    %538 = arith.mulf %533, %537 : vector<8x64xf32>
    %c7_i32_194 = arith.constant 7 : i32
    %539 = arith.truncf %538 : vector<8x64xf32> to vector<8x64xbf16>
    %c0_195 = arith.constant 0 : index
    %c0_196 = arith.constant 0 : index
    %540 = vector.load %arg9[%c0_195, %c0_196] : memref<64x128xbf16, #tpu.memory_space<vmem>>, vector<64x128xbf16>
    %cst_197 = arith.constant dense<0.000000e+00> : vector<8x128xf32>
    %541 = tpu.matmul %539, %540, %cst_197 {dimension_numbers = #tpu.dot_dimension_numbers<[1], [0], [0], [1], [0, 0, 1, 1], [], []>} : vector<8x64xbf16>, vector<64x128xbf16>, vector<8x128xf32> -> vector<8x128xf32>
    %c0_198 = arith.constant 0 : index
    %c0_199 = arith.constant 0 : index
    %542 = vector.load %arg10[%c0_198, %c0_199] : memref<1x128xf32, #tpu.memory_space<vmem>>, vector<1x128xf32>
    %543 = vector.broadcast %542 : vector<1x128xf32> to vector<8x128xf32>
    %544 = arith.addf %541, %543 : vector<8x128xf32>
    %c0_200 = arith.constant 0 : index
    %c0_201 = arith.constant 0 : index
    %545 = vector.load %arg11[%c0_200, %c0_201] : memref<8x128xf32, #tpu.memory_space<vmem>>, vector<8x128xf32>
    tpu.vector_store %arg11[%c0_200, %c0_201], %544 {strides = array<i32>} : memref<8x128xf32, #tpu.memory_space<vmem>>, vector<8x128xf32>,
    return
  }
  func.func @transform_0(%arg0: i32) -> (i32, i32, i32) {
    %c0_i32 = arith.constant 0 : i32
    %c0_i32_0 = arith.constant 0 : i32
    %c0_i32_1 = arith.constant 0 : i32
    return %c0_i32, %arg0, %c0_i32_0 : i32, i32, i32
  }
  func.func @transform_1(%arg0: i32) -> (i32, i32) {
    %c0_i32 = arith.constant 0 : i32
    %c0_i32_0 = arith.constant 0 : i32
    %c0_i32_1 = arith.constant 0 : i32
    return %c0_i32, %c0_i32_0 : i32, i32
  }
  func.func @transform_2(%arg0: i32) -> (i32, i32) {
    %c0_i32 = arith.constant 0 : i32
    %c0_i32_0 = arith.constant 0 : i32
    %c0_i32_1 = arith.constant 0 : i32
    return %c0_i32, %c0_i32_0 : i32, i32
  }
  func.func @transform_3(%arg0: i32) -> (i32, i32, i32) {
    %c0_i32 = arith.constant 0 : i32
    %c0_i32_0 = arith.constant 0 : i32
    %c0_i32_1 = arith.constant 0 : i32
    %c0_i32_2 = arith.constant 0 : i32
    return %c0_i32, %c0_i32_0, %c0_i32_1 : i32, i32, i32
  }
  func.func @transform_4(%arg0: i32) -> (i32, i32, i32) {
    %c0_i32 = arith.constant 0 : i32
    %c0_i32_0 = arith.constant 0 : i32
    %c0_i32_1 = arith.constant 0 : i32
    %c0_i32_2 = arith.constant 0 : i32
    return %c0_i32, %c0_i32_0, %c0_i32_1 : i32, i32, i32
  }
  func.func @transform_5(%arg0: i32) -> (i32, i32, i32) {
    %c0_i32 = arith.constant 0 : i32
    %c0_i32_0 = arith.constant 0 : i32
    %c0_i32_1 = arith.constant 0 : i32
    %c0_i32_2 = arith.constant 0 : i32
    return %c0_i32, %c0_i32_0, %c0_i32_1 : i32, i32, i32
  }
  func.func @transform_6(%arg0: i32) -> (i32, i32, i32) {
    %c0_i32 = arith.constant 0 : i32
    %c0_i32_0 = arith.constant 0 : i32
    %c0_i32_1 = arith.constant 0 : i32
    return %c0_i32, %arg0, %c0_i32_0 : i32, i32, i32
  }
  func.func @transform_7(%arg0: i32) -> (i32, i32, i32) {
    %c0_i32 = arith.constant 0 : i32
    %c0_i32_0 = arith.constant 0 : i32
    %c0_i32_1 = arith.constant 0 : i32
    return %c0_i32, %arg0, %c0_i32_0 : i32, i32, i32
  }
  func.func @transform_8(%arg0: i32) -> (i32, i32) {
    %c0_i32 = arith.constant 0 : i32
    %c0_i32_0 = arith.constant 0 : i32
    %c0_i32_1 = arith.constant 0 : i32
    return %c0_i32, %c0_i32_0 : i32, i32
  }
  func.func @transform_9(%arg0: i32) -> (i32, i32) {
    %c0_i32 = arith.constant 0 : i32
    %c0_i32_0 = arith.constant 0 : i32
    %c0_i32_1 = arith.constant 0 : i32
    return %c0_i32, %c0_i32_0 : i32, i32
  }
  func.func @transform_10(%arg0: i32) -> (i32, i32) {
    %c0_i32 = arith.constant 0 : i32
    %c0_i32_0 = arith.constant 0 : i32
    return %arg0, %c0_i32 : i32, i32
  }
}

</mosaic_0001>

<llo_original>
// kernel: convnet_forward.1
$region0: #{convnet_forward.1}
  #allocation0 [shape = 'u32[]', space=smem, size = 0x4, offset = 0x4, fixed_abs, tag = 'smem constant byte address 0x4 - core index']
  #allocation1 [shape = 'u32[144,128]{1,0:T(1,128)}', space=vmem, size = 0x12000, scoped, tag = 'internal scratch']
  #allocation2 [shape = 'bf16[7,8,64]{2,1,0:T(8,128)(2,1)}', space=vmem, size = 0x3800, scoped, tag = 'scratch operand']
  #allocation3 [shape = 'f32[7,8,256]{2,1,0:T(8,128)}', space=vmem, size = 0xe000, scoped, tag = 'scratch operand']
  %s0 = inlined_call_operand.vmem [shape: bf16[7,8,8], index: 0, kind: input, shape index: {}]
  %s1 = inlined_call_operand.vmem [shape: bf16[8,64], index: 1, kind: input, shape index: {}]
  %s2 = inlined_call_operand.vmem [shape: f32[1,64], index: 2, kind: input, shape index: {}]
  %s3 = inlined_call_operand.vmem [shape: bf16[2,64,256], index: 3, kind: input, shape index: {}]
  %s4 = inlined_call_operand.vmem [shape: bf16[2,64,256], index: 4, kind: input, shape index: {}]
  %s5 = inlined_call_operand.vmem [shape: f32[2,1,256], index: 5, kind: input, shape index: {}]
  %s6 = inlined_call_operand.vmem [shape: f32[2,8,64], index: 6, kind: input, shape index: {}]
  %s7 = inlined_call_operand.vmem [shape: f32[2,8,64], index: 7, kind: input, shape index: {}]
  %s8 = inlined_call_operand.vmem [shape: bf16[64,128], index: 8, kind: input, shape index: {}]
  %s9 = inlined_call_operand.vmem [shape: f32[1,128], index: 9, kind: input, shape index: {}]
  %s10 = inlined_call_operand.vmem [shape: f32[8,128], index: 10, kind: output, shape index: {}]
  %s11 = sld [smem:[#allocation0]]
  $region50: #{convnet_forward.1} parent=0
    _
  %s13 = ssub.s32 1, %s11
  %s14 = scalar_select 0, %s13, %s11
  // Predicated region
  $region2: #{convnet_forward.1} parent=0 // pred_check
    _
  $region3: #{convnet_forward.1} parent=0 // pred_check_branch
    %16 = sbr.rel (0) target = $region5
  $region4: #{convnet_forward.1} parent=0 // pred_region
    _
  $region5: #{convnet_forward.1} parent=0 // pred_fallthru
    _
  // Predicated region
  $region6: #{convnet_forward.1} parent=0 // pred_check
    _
  $region7: #{convnet_forward.1} parent=0 // pred_check_branch
    %18 = sbr.rel (0) target = $region9
  $region8: #{convnet_forward.1} parent=0 // pred_region
    _
  $region9: #{convnet_forward.1} parent=0 // pred_fallthru
    _
  // Predicated region
  $region10: #{convnet_forward.1} parent=0 // pred_check
    _
  $region11: #{convnet_forward.1} parent=0 // pred_check_branch
    %20 = sbr.rel (0) target = $region13
  $region12: #{convnet_forward.1} parent=0 // pred_region
    _
  $region13: #{convnet_forward.1} parent=0 // pred_fallthru
    _
  // Predicated region
  $region14: #{convnet_forward.1} parent=0 // pred_check
    _
  $region15: #{convnet_forward.1} parent=0 // pred_check_branch
    %22 = sbr.rel (0) target = $region17
  $region16: #{convnet_forward.1} parent=0 // pred_region
    _
  $region17: #{convnet_forward.1} parent=0 // pred_fallthru
    _
  // Predicated region
  $region18: #{convnet_forward.1} parent=0 // pred_check
    _
  $region19: #{convnet_forward.1} parent=0 // pred_check_branch
    %24 = sbr.rel (0) target = $region21
  $region20: #{convnet_forward.1} parent=0 // pred_region
    _
  $region21: #{convnet_forward.1} parent=0 // pred_fallthru
    _
  // Predicated region
  $region22: #{convnet_forward.1} parent=0 // pred_check
    _
  $region23: #{convnet_forward.1} parent=0 // pred_check_branch
    %26 = sbr.rel (0) target = $region25
  $region24: #{convnet_forward.1} parent=0 // pred_region
    _
  $region25: #{convnet_forward.1} parent=0 // pred_fallthru
    _
  // Predicated region
  $region26: #{convnet_forward.1} parent=0 // pred_check
    _
  $region27: #{convnet_forward.1} parent=0 // pred_check_branch
    %28 = sbr.rel (0) target = $region29
  $region28: #{convnet_forward.1} parent=0 // pred_region
    _
  $region29: #{convnet_forward.1} parent=0 // pred_fallthru
    _
  // Predicated region
  $region30: #{convnet_forward.1} parent=0 // pred_check
    _
  $region31: #{convnet_forward.1} parent=0 // pred_check_branch
    %30 = sbr.rel (0) target = $region33
  $region32: #{convnet_forward.1} parent=0 // pred_region
    _
  $region33: #{convnet_forward.1} parent=0 // pred_fallthru
    _
  // Predicated region
  $region34: #{convnet_forward.1} parent=0 // pred_check
    _
  $region35: #{convnet_forward.1} parent=0 // pred_check_branch
    %32 = sbr.rel (0) target = $region37
  $region36: #{convnet_forward.1} parent=0 // pred_region
    _
  $region37: #{convnet_forward.1} parent=0 // pred_fallthru
    _
  // Predicated region
  $region38: #{convnet_forward.1} parent=0 // pred_check
    _
  $region39: #{convnet_forward.1} parent=0 // pred_check_branch
    %34 = sbr.rel (0) target = $region41
  $region40: #{convnet_forward.1} parent=0 // pred_region
    _
  $region41: #{convnet_forward.1} parent=0 // pred_fallthru
    _
  %v36 = vld [vmem:[%s0] sm:$0xf]
  %v37 = vld [vmem:[%s0 + $0x4] sm:$0xf]
  %v38 = vld [vmem:[%s0 + $0x8] sm:$0xf]
  %v39 = vld [vmem:[%s0 + $0xc] sm:$0xf]
  %v40 = vld [vmem:[%s0 + $0x10] sm:$0xf]
  %v41 = vld [vmem:[%s0 + $0x14] sm:$0xf]
  %v42 = vld [vmem:[%s0 + $0x18] sm:$0xf]
  %v43 = vld [vmem:[%s1] sm:$0xf]
  %v44 = vld [vmem:[%s2] sm:$0x1]
  %v46 = vlaneseq
  %v47 = vshrl.u32 %v46, 7
  %v48 = vsub.s32 0, %v47
  %v49 = vrot.slane %v44, %v48
  %v58 = vunpack.c.l.b16 %v36
  %v59 = vunpack.c.l.b16 %v37
  %v60 = vunpack.c.l.b16 %v38
  %v61 = vunpack.c.l.b16 %v39
  %v62 = vunpack.c.l.b16 %v40
  %v63 = vunpack.c.l.b16 %v41
  %v64 = vunpack.c.l.b16 %v42
  %v65 = vpack.c.b16 %v59, %v58
  %v66 = vpack.c.b16 %v61, %v60
  %v67 = vpack.c.b16 %v63, %v62
  %v68 = vpack.c.b16 %v64, %v64
  %vm69 = vcmask 64512
  %v71 = vsel %vm69, %v65, 0
  %v74 = vsel %vm69, %v66, 0
  %v77 = vsel %vm69, %v67, 0
  %v80 = vsel %vm69, %v68, 0
  %vm82 = vcmask 1043456
  %v84 = vsel %vm82, %v43, 0
  %86 = vmatprep.subr.bf16.mxu0 0
  %87 = vmatpush1.bf16.msra.mxu0 %v84
  %88 = vmatprep.subr.bf16.mxu0 0
  %89 = vmatpush1.bf16.msra.mxu0 0
  %90 = vmatprep.subr.bf16.mxu0 0
  %91 = vmatpush1.bf16.msra.mxu0 0
  %92 = vmatprep.subr.bf16.mxu0 0
  %93 = vmatpush1.bf16.msra.mxu0 0
  %94 = vmatprep.subr.bf16.mxu0 0
  %95 = vmatpush1.bf16.msra.mxu0 0
  %96 = vmatprep.subr.bf16.mxu0 0
  %97 = vmatpush1.bf16.msra.mxu0 0
  %98 = vmatprep.subr.bf16.mxu0 0
  %99 = vmatpush1.bf16.msra.mxu0 0
  %100 = vmatprep.subr.bf16.mxu0 0
  %101 = vmatpush1.bf16.msra.mxu0 0
  %102 = vmatprep.subr.bf16.mxu0 0
  %103 = vmatpush1.bf16.msra.mxu0 0
  %104 = vmatprep.subr.bf16.mxu0 0
  %105 = vmatpush1.bf16.msra.mxu0 0
  %106 = vmatprep.subr.bf16.mxu0 0
  %107 = vmatpush1.bf16.msra.mxu0 0
  %108 = vmatprep.subr.bf16.mxu0 0
  %109 = vmatpush1.bf16.msra.mxu0 0
  %110 = vmatprep.subr.bf16.mxu0 0
  %111 = vmatpush1.bf16.msra.mxu0 0
  %112 = vmatprep.subr.bf16.mxu0 0
  %113 = vmatpush1.bf16.msra.mxu0 0
  %114 = vmatprep.subr.bf16.mxu0 0
  %115 = vmatpush1.bf16.msra.mxu0 0
  %116 = vmatprep.subr.bf16.mxu0 0
  %117 = vmatpush1.bf16.msra.mxu0 0
  %118 = vmatprep.mubr.bf16.mxu0 0
  %119 = vmatmul.mubr.bf16.gmra.mrb[0].mxu0 %v71
  %v120 = vpop.f32.mrb[0].mxu0
  %v121 = vadd.f32 %v49, %v120
  %v122 = vpop.f32.mrb[0].mxu0
  %v123 = vpop.f32.mrb[0].mxu0
  %v124 = vadd.f32 %v49, %v123
  %v125 = vpop.f32.mrb[0].mxu0
  %126 = vmatprep.mubr.bf16.mxu0 0
  %127 = vmatmul.mubr.bf16.gmra.mrb[0].mxu0 %v74
  %v128 = vpop.f32.mrb[0].mxu0
  %v129 = vadd.f32 %v49, %v128
  %v130 = vpop.f32.mrb[0].mxu0
  %v131 = vpop.f32.mrb[0].mxu0
  %v132 = vadd.f32 %v49, %v131
  %v133 = vpop.f32.mrb[0].mxu0
  %134 = vmatprep.mubr.bf16.mxu0 0
  %135 = vmatmul.mubr.bf16.gmra.mrb[0].mxu0 %v77
  %v136 = vpop.f32.mrb[0].mxu0
  %v137 = vadd.f32 %v49, %v136
  %v138 = vpop.f32.mrb[0].mxu0
  %v139 = vpop.f32.mrb[0].mxu0
  %v140 = vadd.f32 %v49, %v139
  %v141 = vpop.f32.mrb[0].mxu0
  %142 = vmatprep.mubr.bf16.mxu0 0
  %143 = vmatmul.mubr.bf16.gmra.mrb[0].mxu0 %v80
  %v144 = vpop.f32.mrb[0].mxu0
  %v145 = vadd.f32 %v49, %v144
  %v146 = vpop.f32.mrb[0].mxu0
  %v147 = vpop.f32.mrb[0].mxu0
  %v148 = vpop.f32.mrb[0].mxu0
  %149 = vdwg.mxu0
  %v150 = vmax.f32 %v121, 0.0
  %v151 = vmax.f32 %v124, 0.0
  %v152 = vmax.f32 %v129, 0.0
  %v153 = vmax.f32 %v132, 0.0
  %v154 = vmax.f32 %v137, 0.0
  %v155 = vmax.f32 %v140, 0.0
  %v156 = vmax.f32 %v145, 0.0
  %v157 = vpack.c.bf16 %v150, %v150
  %v158 = vpack.c.bf16 %v151, %v151
  %v159 = vpack.c.bf16 %v152, %v152
  %v160 = vpack.c.bf16 %v153, %v153
  %v161 = vpack.c.bf16 %v154, %v154
  %v162 = vpack.c.bf16 %v155, %v155
  %v163 = vpack.c.bf16 %v156, %v156
  %vm164 = vcmask 519168
  %165 = vst.msk [vmem:[#allocation2] sm:$0xf] %vm164, %v157
  %166 = vst.msk [vmem:[#allocation2 + $0x4] sm:$0xf] %vm164, %v158
  %167 = vst.msk [vmem:[#allocation2 + $0x8] sm:$0xf] %vm164, %v159
  %168 = vst.msk [vmem:[#allocation2 + $0xc] sm:$0xf] %vm164, %v160
  %169 = vst.msk [vmem:[#allocation2 + $0x10] sm:$0xf] %vm164, %v161
  %170 = vst.msk [vmem:[#allocation2 + $0x14] sm:$0xf] %vm164, %v162
  %171 = vst.msk [vmem:[#allocation2 + $0x18] sm:$0xf] %vm164, %v163
  %v172 = vld [vmem:[#allocation2] sm:$0xf]
  %v173 = vld [vmem:[#allocation2 + $0x4] sm:$0xf]
  %v174 = vld [vmem:[#allocation2 + $0x8] sm:$0xf]
  %v175 = vld [vmem:[#allocation2 + $0xc] sm:$0xf]
  %v176 = vld [vmem:[#allocation2 + $0x10] sm:$0xf]
  %v177 = vld [vmem:[#allocation2 + $0x14] sm:$0xf]
  %v178 = vld [vmem:[#allocation2 + $0x18] sm:$0xf]
  %v179 = vld [vmem:[%s3] sm:$0xff]
  %v180 = vld [vmem:[%s3 + $0x8] sm:$0xff]
  %v181 = vld [vmem:[%s3 + $0x10] sm:$0xff]
  %v182 = vld [vmem:[%s3 + $0x18] sm:$0xff]
  %v183 = vld [vmem:[%s3 + $0x20] sm:$0xff]
  %v184 = vld [vmem:[%s3 + $0x28] sm:$0xff]
  %v185 = vld [vmem:[%s3 + $0x30] sm:$0xff]
  %v186 = vld [vmem:[%s3 + $0x38] sm:$0xff]
  %v187 = vld [vmem:[%s5] sm:$0x3]
  %v189 = vlaneseq
  %v190 = vshrl.u32 %v189, 7
  %v191 = vsub.s32 0, %v190
  %v192 = vrot.slane %v187, %v191
  %v193 = vlaneseq
  %v194 = vshrl.u32 %v193, 7
  %v195 = vsub.s32 1, %v194
  %v196 = vrot.slane %v187, %v195
  %v206 = vunpack.c.l.b16 %v172
  %v207 = vunpack.c.l.b16 %v173
  %v208 = vunpack.c.l.b16 %v174
  %v209 = vunpack.c.l.b16 %v175
  %v210 = vunpack.c.l.b16 %v176
  %v211 = vunpack.c.l.b16 %v177
  %v212 = vunpack.c.l.b16 %v178
  %v213 = vpack.c.b16 %v207, %v206
  %v214 = vpack.c.b16 %v209, %v208
  %v215 = vpack.c.b16 %v211, %v210
  %v216 = vpack.c.b16 %v212, %v212
  %v225 = vunpack.c.l.b16 %v179
  %v226 = vunpack.c.h.b16 %v179
  %v227 = vunpack.c.l.b16 %v180
  %v228 = vunpack.c.h.b16 %v180
  %v229 = vunpack.c.l.b16 %v181
  %v230 = vunpack.c.h.b16 %v181
  %v231 = vunpack.c.l.b16 %v182
  %v232 = vunpack.c.h.b16 %v182
  %v233 = vunpack.c.l.b16 %v183
  %v234 = vunpack.c.h.b16 %v183
  %v235 = vunpack.c.l.b16 %v184
  %v236 = vunpack.c.h.b16 %v184
  %v237 = vunpack.c.l.b16 %v185
  %v238 = vunpack.c.h.b16 %v185
  %v239 = vunpack.c.l.b16 %v186
  %v240 = vunpack.c.h.b16 %v186
  %v241 = vpack.c.b16 %v227, %v225
  %v242 = vpack.c.b16 %v228, %v226
  %v243 = vpack.c.b16 %v231, %v229
  %v244 = vpack.c.b16 %v232, %v230
  %v245 = vpack.c.b16 %v235, %v233
  %v246 = vpack.c.b16 %v236, %v234
  %v247 = vpack.c.b16 %v239, %v237
  %v248 = vpack.c.b16 %v240, %v238
  %vm257 = vcmask 523264
  %v259 = vsel %vm257, %v213, 0
  %v262 = vsel %vm257, %v214, 0
  %v265 = vsel %vm257, %v215, 0
  %v268 = vsel %vm257, %v216, 0
  %270 = vmatprep.subr.bf16.mxu0 %v242
  %271 = vmatpush1.bf16.msra.mxu0 %v241
  %272 = vmatprep.subr.bf16.mxu0 %v244
  %273 = vmatpush1.bf16.msra.mxu0 %v243
  %274 = vmatprep.subr.bf16.mxu0 %v246
  %275 = vmatpush1.bf16.msra.mxu0 %v245
  %276 = vmatprep.subr.bf16.mxu0 %v248
  %277 = vmatpush1.bf16.msra.mxu0 %v247
  %278 = vmatprep.subr.bf16.mxu0 0
  %279 = vmatpush1.bf16.msra.mxu0 0
  %280 = vmatprep.subr.bf16.mxu0 0
  %281 = vmatpush1.bf16.msra.mxu0 0
  %282 = vmatprep.subr.bf16.mxu0 0
  %283 = vmatpush1.bf16.msra.mxu0 0
  %284 = vmatprep.subr.bf16.mxu0 0
  %285 = vmatpush1.bf16.msra.mxu0 0
  %286 = vmatprep.subr.bf16.mxu0 0
  %287 = vmatpush1.bf16.msra.mxu0 0
  %288 = vmatprep.subr.bf16.mxu0 0
  %289 = vmatpush1.bf16.msra.mxu0 0
  %290 = vmatprep.subr.bf16.mxu0 0
  %291 = vmatpush1.bf16.msra.mxu0 0
  %292 = vmatprep.subr.bf16.mxu0 0
  %293 = vmatpush1.bf16.msra.mxu0 0
  %294 = vmatprep.subr.bf16.mxu0 0
  %295 = vmatpush1.bf16.msra.mxu0 0
  %296 = vmatprep.subr.bf16.mxu0 0
  %297 = vmatpush1.bf16.msra.mxu0 0
  %298 = vmatprep.subr.bf16.mxu0 0
  %299 = vmatpush1.bf16.msra.mxu0 0
  %300 = vmatprep.subr.bf16.mxu0 0
  %301 = vmatpush1.bf16.msra.mxu0 0
  %302 = vmatprep.mubr.bf16.mxu0 0
  %303 = vmatmul.mubr.bf16.gmra.mrb[0].mxu0 %v259
  %v304 = vpop.f32.mrb[0].mxu0
  %v305 = vadd.f32 %v192, %v304
  %v306 = vpop.f32.mrb[0].mxu0
  %v307 = vadd.f32 %v196, %v306
  %v308 = vpop.f32.mrb[0].mxu0
  %v309 = vadd.f32 %v192, %v308
  %v310 = vpop.f32.mrb[0].mxu0
  %v311 = vadd.f32 %v196, %v310
  %312 = vmatprep.mubr.bf16.mxu0 0
  %313 = vmatmul.mubr.bf16.gmra.mrb[0].mxu0 %v262
  %v314 = vpop.f32.mrb[0].mxu0
  %v315 = vadd.f32 %v192, %v314
  %v316 = vpop.f32.mrb[0].mxu0
  %v317 = vadd.f32 %v196, %v316
  %v318 = vpop.f32.mrb[0].mxu0
  %v319 = vadd.f32 %v192, %v318
  %v320 = vpop.f32.mrb[0].mxu0
  %v321 = vadd.f32 %v196, %v320
  %322 = vmatprep.mubr.bf16.mxu0 0
  %323 = vmatmul.mubr.bf16.gmra.mrb[0].mxu0 %v265
  %v324 = vpop.f32.mrb[0].mxu0
  %v325 = vadd.f32 %v192, %v324
  %v326 = vpop.f32.mrb[0].mxu0
  %v327 = vadd.f32 %v196, %v326
  %v328 = vpop.f32.mrb[0].mxu0
  %v329 = vadd.f32 %v192, %v328
  %v330 = vpop.f32.mrb[0].mxu0
  %v331 = vadd.f32 %v196, %v330
  %332 = vmatprep.mubr.bf16.mxu0 0
  %333 = vmatmul.mubr.bf16.gmra.mrb[0].mxu0 %v268
  %v334 = vpop.f32.mrb[0].mxu0
  %v335 = vadd.f32 %v192, %v334
  %v336 = vpop.f32.mrb[0].mxu0
  %v337 = vadd.f32 %v196, %v336
  %v338 = vpop.f32.mrb[0].mxu0
  %v339 = vpop.f32.mrb[0].mxu0
  %340 = vdwg.mxu0
  %341 = vst [vmem:[#allocation3] sm:$0xff] %v305
  %342 = vst [vmem:[#allocation3 + $0x8] sm:$0xff] %v307
  %343 = vst [vmem:[#allocation3 + $0x10] sm:$0xff] %v309
  %344 = vst [vmem:[#allocation3 + $0x18] sm:$0xff] %v311
  %345 = vst [vmem:[#allocation3 + $0x20] sm:$0xff] %v315
  %346 = vst [vmem:[#allocation3 + $0x28] sm:$0xff] %v317
  %347 = vst [vmem:[#allocation3 + $0x30] sm:$0xff] %v319
  %348 = vst [vmem:[#allocation3 + $0x38] sm:$0xff] %v321
  %349 = vst [vmem:[#allocation3 + $0x40] sm:$0xff] %v325
  %350 = vst [vmem:[#allocation3 + $0x48] sm:$0xff] %v327
  %351 = vst [vmem:[#allocation3 + $0x50] sm:$0xff] %v329
  %352 = vst [vmem:[#allocation3 + $0x58] sm:$0xff] %v331
  %353 = vst [vmem:[#allocation3 + $0x60] sm:$0xff] %v335
  %354 = vst [vmem:[#allocation3 + $0x68] sm:$0xff] %v337
  %v355 = vld [vmem:[%s6] sm:$0xff]
  %v356 = vld [vmem:[%s7] sm:$0xff]
  %v357 = vld [vmem:[#allocation3] sm:$0xff]
  %v358 = vld [vmem:[#allocation3 + $0x8] sm:$0xff]
  %v359 = vpack.c.bf16 %v355, %v355
  %v360 = vld [vmem:[%s4] sm:$0xff]
  %v361 = vld [vmem:[%s4 + $0x8] sm:$0xff]
  %v362 = vld [vmem:[%s4 + $0x10] sm:$0xff]
  %v363 = vld [vmem:[%s4 + $0x18] sm:$0xff]
  %v364 = vld [vmem:[%s4 + $0x20] sm:$0xff]
  %v365 = vld [vmem:[%s4 + $0x28] sm:$0xff]
  %v366 = vld [vmem:[%s4 + $0x30] sm:$0xff]
  %v367 = vld [vmem:[%s4 + $0x38] sm:$0xff]
  %v376 = vunpack.c.l.b16 %v360
  %v377 = vunpack.c.h.b16 %v360
  %v378 = vunpack.c.l.b16 %v361
  %v379 = vunpack.c.h.b16 %v361
  %v380 = vunpack.c.l.b16 %v362
  %v381 = vunpack.c.h.b16 %v362
  %v382 = vunpack.c.l.b16 %v363
  %v383 = vunpack.c.h.b16 %v363
  %v384 = vunpack.c.l.b16 %v364
  %v385 = vunpack.c.h.b16 %v364
  %v386 = vunpack.c.l.b16 %v365
  %v387 = vunpack.c.h.b16 %v365
  %v388 = vunpack.c.l.b16 %v366
  %v389 = vunpack.c.h.b16 %v366
  %v390 = vunpack.c.l.b16 %v367
  %v391 = vunpack.c.h.b16 %v367
  %v392 = vpack.c.b16 %v378, %v376
  %v393 = vpack.c.b16 %v379, %v377
  %v394 = vpack.c.b16 %v382, %v380
  %v395 = vpack.c.b16 %v383, %v381
  %v396 = vpack.c.b16 %v386, %v384
  %v397 = vpack.c.b16 %v387, %v385
  %v398 = vpack.c.b16 %v390, %v388
  %v399 = vpack.c.b16 %v391, %v389
  %v409 = vsel %vm257, %v359, 0
  %411 = vmatprep.subr.bf16.mxu0 %v393
  %412 = vmatpush1.bf16.msra.mxu0 %v392
  %413 = vmatprep.subr.bf16.mxu0 %v395
  %414 = vmatpush1.bf16.msra.mxu0 %v394
  %415 = vmatprep.subr.bf16.mxu0 %v397
  %416 = vmatpush1.bf16.msra.mxu0 %v396
  %417 = vmatprep.subr.bf16.mxu0 %v399
  %418 = vmatpush1.bf16.msra.mxu0 %v398
  %419 = vmatprep.subr.bf16.mxu0 0
  %420 = vmatpush1.bf16.msra.mxu0 0
  %421 = vmatprep.subr.bf16.mxu0 0
  %422 = vmatpush1.bf16.msra.mxu0 0
  %423 = vmatprep.subr.bf16.mxu0 0
  %424 = vmatpush1.bf16.msra.mxu0 0
  %425 = vmatprep.subr.bf16.mxu0 0
  %426 = vmatpush1.bf16.msra.mxu0 0
  %427 = vmatprep.subr.bf16.mxu0 0
  %428 = vmatpush1.bf16.msra.mxu0 0
  %429 = vmatprep.subr.bf16.mxu0 0
  %430 = vmatpush1.bf16.msra.mxu0 0
  %431 = vmatprep.subr.bf16.mxu0 0
  %432 = vmatpush1.bf16.msra.mxu0 0
  %433 = vmatprep.subr.bf16.mxu0 0
  %434 = vmatpush1.bf16.msra.mxu0 0
  %435 = vmatprep.subr.bf16.mxu0 0
  %436 = vmatpush1.bf16.msra.mxu0 0
  %437 = vmatprep.subr.bf16.mxu0 0
  %438 = vmatpush1.bf16.msra.mxu0 0
  %439 = vmatprep.subr.bf16.mxu0 0
  %440 = vmatpush1.bf16.msra.mxu0 0
  %441 = vmatprep.subr.bf16.mxu0 0
  %442 = vmatpush1.bf16.msra.mxu0 0
  %443 = vmatprep.mubr.bf16.mxu0 0
  %444 = vmatmul.mubr.bf16.gmra.mrb[0].mxu0 %v409
  %v445 = vpop.f32.mrb[0].mxu0
  %v446 = vadd.f32 0.0, %v445
  %v447 = vpop.f32.mrb[0].mxu0
  %v448 = vadd.f32 0.0, %v447
  %v449 = vpop.f32.mrb[0].mxu0
  %v450 = vpop.f32.mrb[0].mxu0
  %451 = vdwg.mxu0
  %v452 = vadd.f32 %v357, %v446
  %v453 = vadd.f32 %v358, %v448
  %v454 = vxor.u32 %v452, 2147483648
  %v455 = vmul.f32 %v454, 1.442695
  %v456 = vpow.pop %v455
  %v457 = vadd.f32 %v456, 1.0
  %v458 = vrcp.pop %v457
  %v459 = vmul.f32 1.0, %v458
  %v460 = vtanh.pop %v453
  %v461 = vxor.u32 %v453, 2147483648
  %v462 = vmul.f32 %v461, 1.442695
  %v463 = vpow.pop %v462
  %v464 = vadd.f32 %v463, 1.0
  %v465 = vrcp.pop %v464
  %v466 = vmul.f32 1.0, %v465
  %468 = vrot.lane.b32.xlu0 %v356, 64
  %v469 = vpop.permute.xlu0 %468
  %v471 = vmul.f32 %v459, %v469
  %v472 = vmul.f32 %v459, %v460
  %474 = vrot.lane.b32.xlu0 %v472, 64
  %v475 = vpop.permute.xlu0 %474
  %v477 = vadd.f32 %v471, %v475
  %v478 = vtanh.pop %v477
  %v479 = vmul.f32 %v466, %v478
  %v480 = vpack.c.bf16 %v479, %v479
  %v482 = vunpack.c.l.b16 %v480
  %v483 = vpack.c.b16 %v482, %v482
  %484 = vrot.lane.b32.xlu0 %v483, 64
  %v485 = vpop.permute.xlu0 %484
  %487 = vst.msk [vmem:[#allocation2] sm:$0xf] %vm164, %v485
  %s488 = scalar_lea.vmem [#allocation3], 16
  %v489 = vld [vmem:[%s488] sm:$0xff]
  %v490 = vld [vmem:[%s488 + $0x8] sm:$0xff]
  %v491 = vld [vmem:[%s4] sm:$0xff]
  %v492 = vld [vmem:[%s4 + $0x8] sm:$0xff]
  %v493 = vld [vmem:[%s4 + $0x10] sm:$0xff]
  %v494 = vld [vmem:[%s4 + $0x18] sm:$0xff]
  %v495 = vld [vmem:[%s4 + $0x20] sm:$0xff]
  %v496 = vld [vmem:[%s4 + $0x28] sm:$0xff]
  %v497 = vld [vmem:[%s4 + $0x30] sm:$0xff]
  %v498 = vld [vmem:[%s4 + $0x38] sm:$0xff]
  %499 = vrot.lane.b32.xlu0 %v480, 64
  %v500 = vpop.permute.xlu0 %499
  %v509 = vunpack.c.l.b16 %v491
  %v510 = vunpack.c.h.b16 %v491
  %v511 = vunpack.c.l.b16 %v492
  %v512 = vunpack.c.h.b16 %v492
  %v513 = vunpack.c.l.b16 %v493
  %v514 = vunpack.c.h.b16 %v493
  %v515 = vunpack.c.l.b16 %v494
  %v516 = vunpack.c.h.b16 %v494
  %v517 = vunpack.c.l.b16 %v495
  %v518 = vunpack.c.h.b16 %v495
  %v519 = vunpack.c.l.b16 %v496
  %v520 = vunpack.c.h.b16 %v496
  %v521 = vunpack.c.l.b16 %v497
  %v522 = vunpack.c.h.b16 %v497
  %v523 = vunpack.c.l.b16 %v498
  %v524 = vunpack.c.h.b16 %v498
  %v525 = vpack.c.b16 %v511, %v509
  %v526 = vpack.c.b16 %v512, %v510
  %v527 = vpack.c.b16 %v515, %v513
  %v528 = vpack.c.b16 %v516, %v514
  %v529 = vpack.c.b16 %v519, %v517
  %v530 = vpack.c.b16 %v520, %v518
  %v531 = vpack.c.b16 %v523, %v521
  %v532 = vpack.c.b16 %v524, %v522
  %v542 = vsel %vm257, %v500, 0
  %544 = vmatprep.subr.bf16.mxu0 %v526
  %545 = vmatpush1.bf16.msra.mxu0 %v525
  %546 = vmatprep.subr.bf16.mxu0 %v528
  %547 = vmatpush1.bf16.msra.mxu0 %v527
  %548 = vmatprep.subr.bf16.mxu0 %v530
  %549 = vmatpush1.bf16.msra.mxu0 %v529
  %550 = vmatprep.subr.bf16.mxu0 %v532
  %551 = vmatpush1.bf16.msra.mxu0 %v531
  %552 = vmatprep.subr.bf16.mxu0 0
  %553 = vmatpush1.bf16.msra.mxu0 0
  %554 = vmatprep.subr.bf16.mxu0 0
  %555 = vmatpush1.bf16.msra.mxu0 0
  %556 = vmatprep.subr.bf16.mxu0 0
  %557 = vmatpush1.bf16.msra.mxu0 0
  %558 = vmatprep.subr.bf16.mxu0 0
  %559 = vmatpush1.bf16.msra.mxu0 0
  %560 = vmatprep.subr.bf16.mxu0 0
  %561 = vmatpush1.bf16.msra.mxu0 0
  %562 = vmatprep.subr.bf16.mxu0 0
  %563 = vmatpush1.bf16.msra.mxu0 0
  %564 = vmatprep.subr.bf16.mxu0 0
  %565 = vmatpush1.bf16.msra.mxu0 0
  %566 = vmatprep.subr.bf16.mxu0 0
  %567 = vmatpush1.bf16.msra.mxu0 0
  %568 = vmatprep.subr.bf16.mxu0 0
  %569 = vmatpush1.bf16.msra.mxu0 0
  %570 = vmatprep.subr.bf16.mxu0 0
  %571 = vmatpush1.bf16.msra.mxu0 0
  %572 = vmatprep.subr.bf16.mxu0 0
  %573 = vmatpush1.bf16.msra.mxu0 0
  %574 = vmatprep.subr.bf16.mxu0 0
  %575 = vmatpush1.bf16.msra.mxu0 0
  %576 = vmatprep.mubr.bf16.mxu0 0
  %577 = vmatmul.mubr.bf16.gmra.mrb[0].mxu0 %v542
  %v578 = vpop.f32.mrb[0].mxu0
  %v579 = vadd.f32 0.0, %v578
  %v580 = vpop.f32.mrb[0].mxu0
  %v581 = vadd.f32 0.0, %v580
  %v582 = vpop.f32.mrb[0].mxu0
  %v583 = vpop.f32.mrb[0].mxu0
  %584 = vdwg.mxu0
  %v585 = vadd.f32 %v489, %v579
  %v586 = vadd.f32 %v490, %v581
  %v587 = vxor.u32 %v585, 2147483648
  %v588 = vmul.f32 %v587, 1.442695
  %v589 = vpow.pop %v588
  %v590 = vadd.f32 %v589, 1.0
  %v591 = vrcp.pop %v590
  %v592 = vmul.f32 1.0, %v591
  %v593 = vtanh.pop %v586
  %v594 = vxor.u32 %v586, 2147483648
  %v595 = vmul.f32 %v594, 1.442695
  %v596 = vpow.pop %v595
  %v597 = vadd.f32 %v596, 1.0
  %v598 = vrcp.pop %v597
  %v599 = vmul.f32 1.0, %v598
  %v600 = vmul.f32 %v592, %v477
  %v601 = vmul.f32 %v592, %v593
  %603 = vrot.lane.b32.xlu0 %v601, 64
  %v604 = vpop.permute.xlu0 %603
  %v606 = vadd.f32 %v600, %v604
  %v607 = vtanh.pop %v606
  %v608 = vmul.f32 %v599, %v607
  %v609 = vpack.c.bf16 %v608, %v608
  %v611 = vunpack.c.l.b16 %v609
  %v612 = vpack.c.b16 %v611, %v611
  %613 = vrot.lane.b32.xlu0 %v612, 64
  %v614 = vpop.permute.xlu0 %613
  %s616 = scalar_lea.vmem [#allocation2], 4
  %617 = vst.msk [vmem:[%s616] sm:$0xf] %vm164, %v614
  %s618 = scalar_lea.vmem [#allocation3], 32
  %v619 = vld [vmem:[%s618] sm:$0xff]
  %v620 = vld [vmem:[%s618 + $0x8] sm:$0xff]
  %v621 = vld [vmem:[%s4] sm:$0xff]
  %v622 = vld [vmem:[%s4 + $0x8] sm:$0xff]
  %v623 = vld [vmem:[%s4 + $0x10] sm:$0xff]
  %v624 = vld [vmem:[%s4 + $0x18] sm:$0xff]
  %v625 = vld [vmem:[%s4 + $0x20] sm:$0xff]
  %v626 = vld [vmem:[%s4 + $0x28] sm:$0xff]
  %v627 = vld [vmem:[%s4 + $0x30] sm:$0xff]
  %v628 = vld [vmem:[%s4 + $0x38] sm:$0xff]
  %629 = vrot.lane.b32.xlu0 %v609, 64
  %v630 = vpop.permute.xlu0 %629
  %v639 = vunpack.c.l.b16 %v621
  %v640 = vunpack.c.h.b16 %v621
  %v641 = vunpack.c.l.b16 %v622
  %v642 = vunpack.c.h.b16 %v622
  %v643 = vunpack.c.l.b16 %v623
  %v644 = vunpack.c.h.b16 %v623
  %v645 = vunpack.c.l.b16 %v624
  %v646 = vunpack.c.h.b16 %v624
  %v647 = vunpack.c.l.b16 %v625
  %v648 = vunpack.c.h.b16 %v625
  %v649 = vunpack.c.l.b16 %v626
  %v650 = vunpack.c.h.b16 %v626
  %v651 = vunpack.c.l.b16 %v627
  %v652 = vunpack.c.h.b16 %v627
  %v653 = vunpack.c.l.b16 %v628
  %v654 = vunpack.c.h.b16 %v628
  %v655 = vpack.c.b16 %v641, %v639
  %v656 = vpack.c.b16 %v642, %v640
  %v657 = vpack.c.b16 %v645, %v643
  %v658 = vpack.c.b16 %v646, %v644
  %v659 = vpack.c.b16 %v649, %v647
  %v660 = vpack.c.b16 %v650, %v648
  %v661 = vpack.c.b16 %v653, %v651
  %v662 = vpack.c.b16 %v654, %v652
  %v672 = vsel %vm257, %v630, 0
  %674 = vmatprep.subr.bf16.mxu0 %v656
  %675 = vmatpush1.bf16.msra.mxu0 %v655
  %676 = vmatprep.subr.bf16.mxu0 %v658
  %677 = vmatpush1.bf16.msra.mxu0 %v657
  %678 = vmatprep.subr.bf16.mxu0 %v660
  %679 = vmatpush1.bf16.msra.mxu0 %v659
  %680 = vmatprep.subr.bf16.mxu0 %v662
  %681 = vmatpush1.bf16.msra.mxu0 %v661
  %682 = vmatprep.subr.bf16.mxu0 0
  %683 = vmatpush1.bf16.msra.mxu0 0
  %684 = vmatprep.subr.bf16.mxu0 0
  %685 = vmatpush1.bf16.msra.mxu0 0
  %686 = vmatprep.subr.bf16.mxu0 0
  %687 = vmatpush1.bf16.msra.mxu0 0
  %688 = vmatprep.subr.bf16.mxu0 0
  %689 = vmatpush1.bf16.msra.mxu0 0
  %690 = vmatprep.subr.bf16.mxu0 0
  %691 = vmatpush1.bf16.msra.mxu0 0
  %692 = vmatprep.subr.bf16.mxu0 0
  %693 = vmatpush1.bf16.msra.mxu0 0
  %694 = vmatprep.subr.bf16.mxu0 0
  %695 = vmatpush1.bf16.msra.mxu0 0
  %696 = vmatprep.subr.bf16.mxu0 0
  %697 = vmatpush1.bf16.msra.mxu0 0
  %698 = vmatprep.subr.bf16.mxu0 0
  %699 = vmatpush1.bf16.msra.mxu0 0
  %700 = vmatprep.subr.bf16.mxu0 0
  %701 = vmatpush1.bf16.msra.mxu0 0
  %702 = vmatprep.subr.bf16.mxu0 0
  %703 = vmatpush1.bf16.msra.mxu0 0
  %704 = vmatprep.subr.bf16.mxu0 0
  %705 = vmatpush1.bf16.msra.mxu0 0
  %706 = vmatprep.mubr.bf16.mxu0 0
  %707 = vmatmul.mubr.bf16.gmra.mrb[0].mxu0 %v672
  %v708 = vpop.f32.mrb[0].mxu0
  %v709 = vadd.f32 0.0, %v708
  %v710 = vpop.f32.mrb[0].mxu0
  %v711 = vadd.f32 0.0, %v710
  %v712 = vpop.f32.mrb[0].mxu0
  %v713 = vpop.f32.mrb[0].mxu0
  %714 = vdwg.mxu0
  %v715 = vadd.f32 %v619, %v709
  %v716 = vadd.f32 %v620, %v711
  %v717 = vxor.u32 %v715, 2147483648
  %v718 = vmul.f32 %v717, 1.442695
  %v719 = vpow.pop %v718
  %v720 = vadd.f32 %v719, 1.0
  %v721 = vrcp.pop %v720
  %v722 = vmul.f32 1.0, %v721
  %v723 = vtanh.pop %v716
  %v724 = vxor.u32 %v716, 2147483648
  %v725 = vmul.f32 %v724, 1.442695
  %v726 = vpow.pop %v725
  %v727 = vadd.f32 %v726, 1.0
  %v728 = vrcp.pop %v727
  %v729 = vmul.f32 1.0, %v728
  %v730 = vmul.f32 %v722, %v606
  %v731 = vmul.f32 %v722, %v723
  %733 = vrot.lane.b32.xlu0 %v731, 64
  %v734 = vpop.permute.xlu0 %733
  %v736 = vadd.f32 %v730, %v734
  %v737 = vtanh.pop %v736
  %v738 = vmul.f32 %v729, %v737
  %v739 = vpack.c.bf16 %v738, %v738
  %v741 = vunpack.c.l.b16 %v739
  %v742 = vpack.c.b16 %v741, %v741
  %743 = vrot.lane.b32.xlu0 %v742, 64
  %v744 = vpop.permute.xlu0 %743
  %s746 = scalar_lea.vmem [#allocation2], 8
  %747 = vst.msk [vmem:[%s746] sm:$0xf] %vm164, %v744
  %s748 = scalar_lea.vmem [#allocation3], 48
  %v749 = vld [vmem:[%s748] sm:$0xff]
  %v750 = vld [vmem:[%s748 + $0x8] sm:$0xff]
  %v751 = vld [vmem:[%s4] sm:$0xff]
  %v752 = vld [vmem:[%s4 + $0x8] sm:$0xff]
  %v753 = vld [vmem:[%s4 + $0x10] sm:$0xff]
  %v754 = vld [vmem:[%s4 + $0x18] sm:$0xff]
  %v755 = vld [vmem:[%s4 + $0x20] sm:$0xff]
  %v756 = vld [vmem:[%s4 + $0x28] sm:$0xff]
  %v757 = vld [vmem:[%s4 + $0x30] sm:$0xff]
  %v758 = vld [vmem:[%s4 + $0x38] sm:$0xff]
  %759 = vrot.lane.b32.xlu0 %v739, 64
  %v760 = vpop.permute.xlu0 %759
  %v769 = vunpack.c.l.b16 %v751
  %v770 = vunpack.c.h.b16 %v751
  %v771 = vunpack.c.l.b16 %v752
  %v772 = vunpack.c.h.b16 %v752
  %v773 = vunpack.c.l.b16 %v753
  %v774 = vunpack.c.h.b16 %v753
  %v775 = vunpack.c.l.b16 %v754
  %v776 = vunpack.c.h.b16 %v754
  %v777 = vunpack.c.l.b16 %v755
  %v778 = vunpack.c.h.b16 %v755
  %v779 = vunpack.c.l.b16 %v756
  %v780 = vunpack.c.h.b16 %v756
  %v781 = vunpack.c.l.b16 %v757
  %v782 = vunpack.c.h.b16 %v757
  %v783 = vunpack.c.l.b16 %v758
  %v784 = vunpack.c.h.b16 %v758
  %v785 = vpack.c.b16 %v771, %v769
  %v786 = vpack.c.b16 %v772, %v770
  %v787 = vpack.c.b16 %v775, %v773
  %v788 = vpack.c.b16 %v776, %v774
  %v789 = vpack.c.b16 %v779, %v777
  %v790 = vpack.c.b16 %v780, %v778
  %v791 = vpack.c.b16 %v783, %v781
  %v792 = vpack.c.b16 %v784, %v782
  %v802 = vsel %vm257, %v760, 0
  %804 = vmatprep.subr.bf16.mxu0 %v786
  %805 = vmatpush1.bf16.msra.mxu0 %v785
  %806 = vmatprep.subr.bf16.mxu0 %v788
  %807 = vmatpush1.bf16.msra.mxu0 %v787
  %808 = vmatprep.subr.bf16.mxu0 %v790
  %809 = vmatpush1.bf16.msra.mxu0 %v789
  %810 = vmatprep.subr.bf16.mxu0 %v792
  %811 = vmatpush1.bf16.msra.mxu0 %v791
  %812 = vmatprep.subr.bf16.mxu0 0
  %813 = vmatpush1.bf16.msra.mxu0 0
  %814 = vmatprep.subr.bf16.mxu0 0
  %815 = vmatpush1.bf16.msra.mxu0 0
  %816 = vmatprep.subr.bf16.mxu0 0
  %817 = vmatpush1.bf16.msra.mxu0 0
  %818 = vmatprep.subr.bf16.mxu0 0
  %819 = vmatpush1.bf16.msra.mxu0 0
  %820 = vmatprep.subr.bf16.mxu0 0
  %821 = vmatpush1.bf16.msra.mxu0 0
  %822 = vmatprep.subr.bf16.mxu0 0
  %823 = vmatpush1.bf16.msra.mxu0 0
  %824 = vmatprep.subr.bf16.mxu0 0
  %825 = vmatpush1.bf16.msra.mxu0 0
  %826 = vmatprep.subr.bf16.mxu0 0
  %827 = vmatpush1.bf16.msra.mxu0 0
  %828 = vmatprep.subr.bf16.mxu0 0
  %829 = vmatpush1.bf16.msra.mxu0 0
  %830 = vmatprep.subr.bf16.mxu0 0
  %831 = vmatpush1.bf16.msra.mxu0 0
  %832 = vmatprep.subr.bf16.mxu0 0
  %833 = vmatpush1.bf16.msra.mxu0 0
  %834 = vmatprep.subr.bf16.mxu0 0
  %835 = vmatpush1.bf16.msra.mxu0 0
  %836 = vmatprep.mubr.bf16.mxu0 0
  %837 = vmatmul.mubr.bf16.gmra.mrb[0].mxu0 %v802
  %v838 = vpop.f32.mrb[0].mxu0
  %v839 = vadd.f32 0.0, %v838
  %v840 = vpop.f32.mrb[0].mxu0
  %v841 = vadd.f32 0.0, %v840
  %v842 = vpop.f32.mrb[0].mxu0
  %v843 = vpop.f32.mrb[0].mxu0
  %844 = vdwg.mxu0
  %v845 = vadd.f32 %v749, %v839
  %v846 = vadd.f32 %v750, %v841
  %v847 = vxor.u32 %v845, 2147483648
  %v848 = vmul.f32 %v847, 1.442695
  %v849 = vpow.pop %v848
  %v850 = vadd.f32 %v849, 1.0
  %v851 = vrcp.pop %v850
  %v852 = vmul.f32 1.0, %v851
  %v853 = vtanh.pop %v846
  %v854 = vxor.u32 %v846, 2147483648
  %v855 = vmul.f32 %v854, 1.442695
  %v856 = vpow.pop %v855
  %v857 = vadd.f32 %v856, 1.0
  %v858 = vrcp.pop %v857
  %v859 = vmul.f32 1.0, %v858
  %v860 = vmul.f32 %v852, %v736
  %v861 = vmul.f32 %v852, %v853
  %863 = vrot.lane.b32.xlu0 %v861, 64
  %v864 = vpop.permute.xlu0 %863
  %v866 = vadd.f32 %v860, %v864
  %v867 = vtanh.pop %v866
  %v868 = vmul.f32 %v859, %v867
  %v869 = vpack.c.bf16 %v868, %v868
  %v871 = vunpack.c.l.b16 %v869
  %v872 = vpack.c.b16 %v871, %v871
  %873 = vrot.lane.b32.xlu0 %v872, 64
  %v874 = vpop.permute.xlu0 %873
  %s876 = scalar_lea.vmem [#allocation2], 12
  %877 = vst.msk [vmem:[%s876] sm:$0xf] %vm164, %v874
  %s878 = scalar_lea.vmem [#allocation3], 64
  %v879 = vld [vmem:[%s878] sm:$0xff]
  %v880 = vld [vmem:[%s878 + $0x8] sm:$0xff]
  %v881 = vld [vmem:[%s4] sm:$0xff]
  %v882 = vld [vmem:[%s4 + $0x8] sm:$0xff]
  %v883 = vld [vmem:[%s4 + $0x10] sm:$0xff]
  %v884 = vld [vmem:[%s4 + $0x18] sm:$0xff]
  %v885 = vld [vmem:[%s4 + $0x20] sm:$0xff]
  %v886 = vld [vmem:[%s4 + $0x28] sm:$0xff]
  %v887 = vld [vmem:[%s4 + $0x30] sm:$0xff]
  %v888 = vld [vmem:[%s4 + $0x38] sm:$0xff]
  %889 = vrot.lane.b32.xlu0 %v869, 64
  %v890 = vpop.permute.xlu0 %889
  %v899 = vunpack.c.l.b16 %v881
  %v900 = vunpack.c.h.b16 %v881
  %v901 = vunpack.c.l.b16 %v882
  %v902 = vunpack.c.h.b16 %v882
  %v903 = vunpack.c.l.b16 %v883
  %v904 = vunpack.c.h.b16 %v883
  %v905 = vunpack.c.l.b16 %v884
  %v906 = vunpack.c.h.b16 %v884
  %v907 = vunpack.c.l.b16 %v885
  %v908 = vunpack.c.h.b16 %v885
  %v909 = vunpack.c.l.b16 %v886
  %v910 = vunpack.c.h.b16 %v886
  %v911 = vunpack.c.l.b16 %v887
  %v912 = vunpack.c.h.b16 %v887
  %v913 = vunpack.c.l.b16 %v888
  %v914 = vunpack.c.h.b16 %v888
  %v915 = vpack.c.b16 %v901, %v899
  %v916 = vpack.c.b16 %v902, %v900
  %v917 = vpack.c.b16 %v905, %v903
  %v918 = vpack.c.b16 %v906, %v904
  %v919 = vpack.c.b16 %v909, %v907
  %v920 = vpack.c.b16 %v910, %v908
  %v921 = vpack.c.b16 %v913, %v911
  %v922 = vpack.c.b16 %v914, %v912
  %v932 = vsel %vm257, %v890, 0
  %934 = vmatprep.subr.bf16.mxu0 %v916
  %935 = vmatpush1.bf16.msra.mxu0 %v915
  %936 = vmatprep.subr.bf16.mxu0 %v918
  %937 = vmatpush1.bf16.msra.mxu0 %v917
  %938 = vmatprep.subr.bf16.mxu0 %v920
  %939 = vmatpush1.bf16.msra.mxu0 %v919
  %940 = vmatprep.subr.bf16.mxu0 %v922
  %941 = vmatpush1.bf16.msra.mxu0 %v921
  %942 = vmatprep.subr.bf16.mxu0 0
  %943 = vmatpush1.bf16.msra.mxu0 0
  %944 = vmatprep.subr.bf16.mxu0 0
  %945 = vmatpush1.bf16.msra.mxu0 0
  %946 = vmatprep.subr.bf16.mxu0 0
  %947 = vmatpush1.bf16.msra.mxu0 0
  %948 = vmatprep.subr.bf16.mxu0 0
  %949 = vmatpush1.bf16.msra.mxu0 0
  %950 = vmatprep.subr.bf16.mxu0 0
  %951 = vmatpush1.bf16.msra.mxu0 0
  %952 = vmatprep.subr.bf16.mxu0 0
  %953 = vmatpush1.bf16.msra.mxu0 0
  %954 = vmatprep.subr.bf16.mxu0 0
  %955 = vmatpush1.bf16.msra.mxu0 0
  %956 = vmatprep.subr.bf16.mxu0 0
  %957 = vmatpush1.bf16.msra.mxu0 0
  %958 = vmatprep.subr.bf16.mxu0 0
  %959 = vmatpush1.bf16.msra.mxu0 0
  %960 = vmatprep.subr.bf16.mxu0 0
  %961 = vmatpush1.bf16.msra.mxu0 0
  %962 = vmatprep.subr.bf16.mxu0 0
  %963 = vmatpush1.bf16.msra.mxu0 0
  %964 = vmatprep.subr.bf16.mxu0 0
  %965 = vmatpush1.bf16.msra.mxu0 0
  %966 = vmatprep.mubr.bf16.mxu0 0
  %967 = vmatmul.mubr.bf16.gmra.mrb[0].mxu0 %v932
  %v968 = vpop.f32.mrb[0].mxu0
  %v969 = vadd.f32 0.0, %v968
  %v970 = vpop.f32.mrb[0].mxu0
  %v971 = vadd.f32 0.0, %v970
  %v972 = vpop.f32.mrb[0].mxu0
  %v973 = vpop.f32.mrb[0].mxu0
  %974 = vdwg.mxu0
  %v975 = vadd.f32 %v879, %v969
  %v976 = vadd.f32 %v880, %v971
  %v977 = vxor.u32 %v975, 2147483648
  %v978 = vmul.f32 %v977, 1.442695
  %v979 = vpow.pop %v978
  %v980 = vadd.f32 %v979, 1.0
  %v981 = vrcp.pop %v980
  %v982 = vmul.f32 1.0, %v981
  %v983 = vtanh.pop %v976
  %v984 = vxor.u32 %v976, 2147483648
  %v985 = vmul.f32 %v984, 1.442695
  %v986 = vpow.pop %v985
  %v987 = vadd.f32 %v986, 1.0
  %v988 = vrcp.pop %v987
  %v989 = vmul.f32 1.0, %v988
  %v990 = vmul.f32 %v982, %v866
  %v991 = vmul.f32 %v982, %v983
  %993 = vrot.lane.b32.xlu0 %v991, 64
  %v994 = vpop.permute.xlu0 %993
  %v996 = vadd.f32 %v990, %v994
  %v997 = vtanh.pop %v996
  %v998 = vmul.f32 %v989, %v997
  %v999 = vpack.c.bf16 %v998, %v998
  %v1001 = vunpack.c.l.b16 %v999
  %v1002 = vpack.c.b16 %v1001, %v1001
  %1003 = vrot.lane.b32.xlu0 %v1002, 64
  %v1004 = vpop.permute.xlu0 %1003
  %s1006 = scalar_lea.vmem [#allocation2], 16
  %1007 = vst.msk [vmem:[%s1006] sm:$0xf] %vm164, %v1004
  %s1008 = scalar_lea.vmem [#allocation3], 80
  %v1009 = vld [vmem:[%s1008] sm:$0xff]
  %v1010 = vld [vmem:[%s1008 + $0x8] sm:$0xff]
  %v1011 = vld [vmem:[%s4] sm:$0xff]
  %v1012 = vld [vmem:[%s4 + $0x8] sm:$0xff]
  %v1013 = vld [vmem:[%s4 + $0x10] sm:$0xff]
  %v1014 = vld [vmem:[%s4 + $0x18] sm:$0xff]
  %v1015 = vld [vmem:[%s4 + $0x20] sm:$0xff]
  %v1016 = vld [vmem:[%s4 + $0x28] sm:$0xff]
  %v1017 = vld [vmem:[%s4 + $0x30] sm:$0xff]
  %v1018 = vld [vmem:[%s4 + $0x38] sm:$0xff]
  %1019 = vrot.lane.b32.xlu0 %v999, 64
  %v1020 = vpop.permute.xlu0 %1019
  %v1029 = vunpack.c.l.b16 %v1011
  %v1030 = vunpack.c.h.b16 %v1011
  %v1031 = vunpack.c.l.b16 %v1012
  %v1032 = vunpack.c.h.b16 %v1012
  %v1033 = vunpack.c.l.b16 %v1013
  %v1034 = vunpack.c.h.b16 %v1013
  %v1035 = vunpack.c.l.b16 %v1014
  %v1036 = vunpack.c.h.b16 %v1014
  %v1037 = vunpack.c.l.b16 %v1015
  %v1038 = vunpack.c.h.b16 %v1015
  %v1039 = vunpack.c.l.b16 %v1016
  %v1040 = vunpack.c.h.b16 %v1016
  %v1041 = vunpack.c.l.b16 %v1017
  %v1042 = vunpack.c.h.b16 %v1017
  %v1043 = vunpack.c.l.b16 %v1018
  %v1044 = vunpack.c.h.b16 %v1018
  %v1045 = vpack.c.b16 %v1031, %v1029
  %v1046 = vpack.c.b16 %v1032, %v1030
  %v1047 = vpack.c.b16 %v1035, %v1033
  %v1048 = vpack.c.b16 %v1036, %v1034
  %v1049 = vpack.c.b16 %v1039, %v1037
  %v1050 = vpack.c.b16 %v1040, %v1038
  %v1051 = vpack.c.b16 %v1043, %v1041
  %v1052 = vpack.c.b16 %v1044, %v1042
  %v1062 = vsel %vm257, %v1020, 0
  %1064 = vmatprep.subr.bf16.mxu0 %v1046
  %1065 = vmatpush1.bf16.msra.mxu0 %v1045
  %1066 = vmatprep.subr.bf16.mxu0 %v1048
  %1067 = vmatpush1.bf16.msra.mxu0 %v1047
  %1068 = vmatprep.subr.bf16.mxu0 %v1050
  %1069 = vmatpush1.bf16.msra.mxu0 %v1049
  %1070 = vmatprep.subr.bf16.mxu0 %v1052
  %1071 = vmatpush1.bf16.msra.mxu0 %v1051
  %1072 = vmatprep.subr.bf16.mxu0 0
  %1073 = vmatpush1.bf16.msra.mxu0 0
  %1074 = vmatprep.subr.bf16.mxu0 0
  %1075 = vmatpush1.bf16.msra.mxu0 0
  %1076 = vmatprep.subr.bf16.mxu0 0
  %1077 = vmatpush1.bf16.msra.mxu0 0
  %1078 = vmatprep.subr.bf16.mxu0 0
  %1079 = vmatpush1.bf16.msra.mxu0 0
  %1080 = vmatprep.subr.bf16.mxu0 0
  %1081 = vmatpush1.bf16.msra.mxu0 0
  %1082 = vmatprep.subr.bf16.mxu0 0
  %1083 = vmatpush1.bf16.msra.mxu0 0
  %1084 = vmatprep.subr.bf16.mxu0 0
  %1085 = vmatpush1.bf16.msra.mxu0 0
  %1086 = vmatprep.subr.bf16.mxu0 0
  %1087 = vmatpush1.bf16.msra.mxu0 0
  %1088 = vmatprep.subr.bf16.mxu0 0
  %1089 = vmatpush1.bf16.msra.mxu0 0
  %1090 = vmatprep.subr.bf16.mxu0 0
  %1091 = vmatpush1.bf16.msra.mxu0 0
  %1092 = vmatprep.subr.bf16.mxu0 0
  %1093 = vmatpush1.bf16.msra.mxu0 0
  %1094 = vmatprep.subr.bf16.mxu0 0
  %1095 = vmatpush1.bf16.msra.mxu0 0
  %1096 = vmatprep.mubr.bf16.mxu0 0
  %1097 = vmatmul.mubr.bf16.gmra.mrb[0].mxu0 %v1062
  %v1098 = vpop.f32.mrb[0].mxu0
  %v1099 = vadd.f32 0.0, %v1098
  %v1100 = vpop.f32.mrb[0].mxu0
  %v1101 = vadd.f32 0.0, %v1100
  %v1102 = vpop.f32.mrb[0].mxu0
  %v1103 = vpop.f32.mrb[0].mxu0
  %1104 = vdwg.mxu0
  %v1105 = vadd.f32 %v1009, %v1099
  %v1106 = vadd.f32 %v1010, %v1101
  %v1107 = vxor.u32 %v1105, 2147483648
  %v1108 = vmul.f32 %v1107, 1.442695
  %v1109 = vpow.pop %v1108
  %v1110 = vadd.f32 %v1109, 1.0
  %v1111 = vrcp.pop %v1110
  %v1112 = vmul.f32 1.0, %v1111
  %v1113 = vtanh.pop %v1106
  %v1114 = vxor.u32 %v1106, 2147483648
  %v1115 = vmul.f32 %v1114, 1.442695
  %v1116 = vpow.pop %v1115
  %v1117 = vadd.f32 %v1116, 1.0
  %v1118 = vrcp.pop %v1117
  %v1119 = vmul.f32 1.0, %v1118
  %v1120 = vmul.f32 %v1112, %v996
  %v1121 = vmul.f32 %v1112, %v1113
  %1123 = vrot.lane.b32.xlu0 %v1121, 64
  %v1124 = vpop.permute.xlu0 %1123
  %v1126 = vadd.f32 %v1120, %v1124
  %v1127 = vtanh.pop %v1126
  %v1128 = vmul.f32 %v1119, %v1127
  %v1129 = vpack.c.bf16 %v1128, %v1128
  %v1131 = vunpack.c.l.b16 %v1129
  %v1132 = vpack.c.b16 %v1131, %v1131
  %1133 = vrot.lane.b32.xlu0 %v1132, 64
  %v1134 = vpop.permute.xlu0 %1133
  %s1136 = scalar_lea.vmem [#allocation2], 20
  %1137 = vst.msk [vmem:[%s1136] sm:$0xf] %vm164, %v1134
  %s1138 = scalar_lea.vmem [#allocation3], 96
  %v1139 = vld [vmem:[%s1138] sm:$0xff]
  %v1140 = vld [vmem:[%s1138 + $0x8] sm:$0xff]
  %v1141 = vld [vmem:[%s4] sm:$0xff]
  %v1142 = vld [vmem:[%s4 + $0x8] sm:$0xff]
  %v1143 = vld [vmem:[%s4 + $0x10] sm:$0xff]
  %v1144 = vld [vmem:[%s4 + $0x18] sm:$0xff]
  %v1145 = vld [vmem:[%s4 + $0x20] sm:$0xff]
  %v1146 = vld [vmem:[%s4 + $0x28] sm:$0xff]
  %v1147 = vld [vmem:[%s4 + $0x30] sm:$0xff]
  %v1148 = vld [vmem:[%s4 + $0x38] sm:$0xff]
  %1149 = vrot.lane.b32.xlu0 %v1129, 64
  %v1150 = vpop.permute.xlu0 %1149
  %v1159 = vunpack.c.l.b16 %v1141
  %v1160 = vunpack.c.h.b16 %v1141
  %v1161 = vunpack.c.l.b16 %v1142
  %v1162 = vunpack.c.h.b16 %v1142
  %v1163 = vunpack.c.l.b16 %v1143
  %v1164 = vunpack.c.h.b16 %v1143
  %v1165 = vunpack.c.l.b16 %v1144
  %v1166 = vunpack.c.h.b16 %v1144
  %v1167 = vunpack.c.l.b16 %v1145
  %v1168 = vunpack.c.h.b16 %v1145
  %v1169 = vunpack.c.l.b16 %v1146
  %v1170 = vunpack.c.h.b16 %v1146
  %v1171 = vunpack.c.l.b16 %v1147
  %v1172 = vunpack.c.h.b16 %v1147
  %v1173 = vunpack.c.l.b16 %v1148
  %v1174 = vunpack.c.h.b16 %v1148
  %v1175 = vpack.c.b16 %v1161, %v1159
  %v1176 = vpack.c.b16 %v1162, %v1160
  %v1177 = vpack.c.b16 %v1165, %v1163
  %v1178 = vpack.c.b16 %v1166, %v1164
  %v1179 = vpack.c.b16 %v1169, %v1167
  %v1180 = vpack.c.b16 %v1170, %v1168
  %v1181 = vpack.c.b16 %v1173, %v1171
  %v1182 = vpack.c.b16 %v1174, %v1172
  %v1192 = vsel %vm257, %v1150, 0
  %1194 = vmatprep.subr.bf16.mxu0 %v1176
  %1195 = vmatpush1.bf16.msra.mxu0 %v1175
  %1196 = vmatprep.subr.bf16.mxu0 %v1178
  %1197 = vmatpush1.bf16.msra.mxu0 %v1177
  %1198 = vmatprep.subr.bf16.mxu0 %v1180
  %1199 = vmatpush1.bf16.msra.mxu0 %v1179
  %1200 = vmatprep.subr.bf16.mxu0 %v1182
  %1201 = vmatpush1.bf16.msra.mxu0 %v1181
  %1202 = vmatprep.subr.bf16.mxu0 0
  %1203 = vmatpush1.bf16.msra.mxu0 0
  %1204 = vmatprep.subr.bf16.mxu0 0
  %1205 = vmatpush1.bf16.msra.mxu0 0
  %1206 = vmatprep.subr.bf16.mxu0 0
  %1207 = vmatpush1.bf16.msra.mxu0 0
  %1208 = vmatprep.subr.bf16.mxu0 0
  %1209 = vmatpush1.bf16.msra.mxu0 0
  %1210 = vmatprep.subr.bf16.mxu0 0
  %1211 = vmatpush1.bf16.msra.mxu0 0
  %1212 = vmatprep.subr.bf16.mxu0 0
  %1213 = vmatpush1.bf16.msra.mxu0 0
  %1214 = vmatprep.subr.bf16.mxu0 0
  %1215 = vmatpush1.bf16.msra.mxu0 0
  %1216 = vmatprep.subr.bf16.mxu0 0
  %1217 = vmatpush1.bf16.msra.mxu0 0
  %1218 = vmatprep.subr.bf16.mxu0 0
  %1219 = vmatpush1.bf16.msra.mxu0 0
  %1220 = vmatprep.subr.bf16.mxu0 0
  %1221 = vmatpush1.bf16.msra.mxu0 0
  %1222 = vmatprep.subr.bf16.mxu0 0
  %1223 = vmatpush1.bf16.msra.mxu0 0
  %1224 = vmatprep.subr.bf16.mxu0 0
  %1225 = vmatpush1.bf16.msra.mxu0 0
  %1226 = vmatprep.mubr.bf16.mxu0 0
  %1227 = vmatmul.mubr.bf16.gmra.mrb[0].mxu0 %v1192
  %v1228 = vpop.f32.mrb[0].mxu0
  %v1229 = vadd.f32 0.0, %v1228
  %v1230 = vpop.f32.mrb[0].mxu0
  %v1231 = vadd.f32 0.0, %v1230
  %v1232 = vpop.f32.mrb[0].mxu0
  %v1233 = vpop.f32.mrb[0].mxu0
  %1234 = vdwg.mxu0
  %v1235 = vadd.f32 %v1139, %v1229
  %v1236 = vadd.f32 %v1140, %v1231
  %v1237 = vxor.u32 %v1235, 2147483648
  %v1238 = vmul.f32 %v1237, 1.442695
  %v1239 = vpow.pop %v1238
  %v1240 = vadd.f32 %v1239, 1.0
  %v1241 = vrcp.pop %v1240
  %v1242 = vmul.f32 1.0, %v1241
  %v1243 = vtanh.pop %v1236
  %v1244 = vxor.u32 %v1236, 2147483648
  %v1245 = vmul.f32 %v1244, 1.442695
  %v1246 = vpow.pop %v1245
  %v1247 = vadd.f32 %v1246, 1.0
  %v1248 = vrcp.pop %v1247
  %v1249 = vmul.f32 1.0, %v1248
  %v1250 = vmul.f32 %v1242, %v1126
  %v1251 = vmul.f32 %v1242, %v1243
  %1253 = vrot.lane.b32.xlu0 %v1251, 64
  %v1254 = vpop.permute.xlu0 %1253
  %v1256 = vadd.f32 %v1250, %v1254
  %v1257 = vtanh.pop %v1256
  %v1258 = vmul.f32 %v1249, %v1257
  %v1259 = vpack.c.bf16 %v1258, %v1258
  %v1261 = vunpack.c.l.b16 %v1259
  %v1262 = vpack.c.b16 %v1261, %v1261
  %1263 = vrot.lane.b32.xlu0 %v1262, 64
  %v1264 = vpop.permute.xlu0 %1263
  %s1266 = scalar_lea.vmem [#allocation2], 24
  %1267 = vst.msk [vmem:[%s1266] sm:$0xf] %vm164, %v1264
  %v1268 = vld [vmem:[#allocation2] sm:$0xf]
  %v1269 = vld [vmem:[#allocation2 + $0x4] sm:$0xf]
  %v1270 = vld [vmem:[#allocation2 + $0x8] sm:$0xf]
  %v1271 = vld [vmem:[#allocation2 + $0xc] sm:$0xf]
  %v1272 = vld [vmem:[#allocation2 + $0x10] sm:$0xf]
  %v1273 = vld [vmem:[#allocation2 + $0x14] sm:$0xf]
  %v1274 = vld [vmem:[#allocation2 + $0x18] sm:$0xf]
  %s1275 = scalar_lea.vmem %s3, 64
  %v1276 = vld [vmem:[%s1275] sm:$0xff]
  %v1277 = vld [vmem:[%s1275 + $0x8] sm:$0xff]
  %v1278 = vld [vmem:[%s1275 + $0x10] sm:$0xff]
  %v1279 = vld [vmem:[%s1275 + $0x18] sm:$0xff]
  %v1280 = vld [vmem:[%s1275 + $0x20] sm:$0xff]
  %v1281 = vld [vmem:[%s1275 + $0x28] sm:$0xff]
  %v1282 = vld [vmem:[%s1275 + $0x30] sm:$0xff]
  %v1283 = vld [vmem:[%s1275 + $0x38] sm:$0xff]
  %s1284 = scalar_lea.vmem %s5, 2
  %v1285 = vld [vmem:[%s1284] sm:$0x3]
  %v1287 = vlaneseq
  %v1288 = vshrl.u32 %v1287, 7
  %v1289 = vsub.s32 0, %v1288
  %v1290 = vrot.slane %v1285, %v1289
  %v1291 = vlaneseq
  %v1292 = vshrl.u32 %v1291, 7
  %v1293 = vsub.s32 1, %v1292
  %v1294 = vrot.slane %v1285, %v1293
  %v1304 = vunpack.c.l.b16 %v1268
  %v1305 = vunpack.c.l.b16 %v1269
  %v1306 = vunpack.c.l.b16 %v1270
  %v1307 = vunpack.c.l.b16 %v1271
  %v1308 = vunpack.c.l.b16 %v1272
  %v1309 = vunpack.c.l.b16 %v1273
  %v1310 = vunpack.c.l.b16 %v1274
  %v1311 = vpack.c.b16 %v1305, %v1304
  %v1312 = vpack.c.b16 %v1307, %v1306
  %v1313 = vpack.c.b16 %v1309, %v1308
  %v1314 = vpack.c.b16 %v1310, %v1310
  %v1323 = vunpack.c.l.b16 %v1276
  %v1324 = vunpack.c.h.b16 %v1276
  %v1325 = vunpack.c.l.b16 %v1277
  %v1326 = vunpack.c.h.b16 %v1277
  %v1327 = vunpack.c.l.b16 %v1278
  %v1328 = vunpack.c.h.b16 %v1278
  %v1329 = vunpack.c.l.b16 %v1279
  %v1330 = vunpack.c.h.b16 %v1279
  %v1331 = vunpack.c.l.b16 %v1280
  %v1332 = vunpack.c.h.b16 %v1280
  %v1333 = vunpack.c.l.b16 %v1281
  %v1334 = vunpack.c.h.b16 %v1281
  %v1335 = vunpack.c.l.b16 %v1282
  %v1336 = vunpack.c.h.b16 %v1282
  %v1337 = vunpack.c.l.b16 %v1283
  %v1338 = vunpack.c.h.b16 %v1283
  %v1339 = vpack.c.b16 %v1325, %v1323
  %v1340 = vpack.c.b16 %v1326, %v1324
  %v1341 = vpack.c.b16 %v1329, %v1327
  %v1342 = vpack.c.b16 %v1330, %v1328
  %v1343 = vpack.c.b16 %v1333, %v1331
  %v1344 = vpack.c.b16 %v1334, %v1332
  %v1345 = vpack.c.b16 %v1337, %v1335
  %v1346 = vpack.c.b16 %v1338, %v1336
  %v1356 = vsel %vm257, %v1311, 0
  %v1359 = vsel %vm257, %v1312, 0
  %v1362 = vsel %vm257, %v1313, 0
  %v1365 = vsel %vm257, %v1314, 0
  %1367 = vmatprep.subr.bf16.mxu0 %v1340
  %1368 = vmatpush1.bf16.msra.mxu0 %v1339
  %1369 = vmatprep.subr.bf16.mxu0 %v1342
  %1370 = vmatpush1.bf16.msra.mxu0 %v1341
  %1371 = vmatprep.subr.bf16.mxu0 %v1344
  %1372 = vmatpush1.bf16.msra.mxu0 %v1343
  %1373 = vmatprep.subr.bf16.mxu0 %v1346
  %1374 = vmatpush1.bf16.msra.mxu0 %v1345
  %1375 = vmatprep.subr.bf16.mxu0 0
  %1376 = vmatpush1.bf16.msra.mxu0 0
  %1377 = vmatprep.subr.bf16.mxu0 0
  %1378 = vmatpush1.bf16.msra.mxu0 0
  %1379 = vmatprep.subr.bf16.mxu0 0
  %1380 = vmatpush1.bf16.msra.mxu0 0
  %1381 = vmatprep.subr.bf16.mxu0 0
  %1382 = vmatpush1.bf16.msra.mxu0 0
  %1383 = vmatprep.subr.bf16.mxu0 0
  %1384 = vmatpush1.bf16.msra.mxu0 0
  %1385 = vmatprep.subr.bf16.mxu0 0
  %1386 = vmatpush1.bf16.msra.mxu0 0
  %1387 = vmatprep.subr.bf16.mxu0 0
  %1388 = vmatpush1.bf16.msra.mxu0 0
  %1389 = vmatprep.subr.bf16.mxu0 0
  %1390 = vmatpush1.bf16.msra.mxu0 0
  %1391 = vmatprep.subr.bf16.mxu0 0
  %1392 = vmatpush1.bf16.msra.mxu0 0
  %1393 = vmatprep.subr.bf16.mxu0 0
  %1394 = vmatpush1.bf16.msra.mxu0 0
  %1395 = vmatprep.subr.bf16.mxu0 0
  %1396 = vmatpush1.bf16.msra.mxu0 0
  %1397 = vmatprep.subr.bf16.mxu0 0
  %1398 = vmatpush1.bf16.msra.mxu0 0
  %1399 = vmatprep.mubr.bf16.mxu0 0
  %1400 = vmatmul.mubr.bf16.gmra.mrb[0].mxu0 %v1356
  %v1401 = vpop.f32.mrb[0].mxu0
  %v1402 = vadd.f32 %v1290, %v1401
  %v1403 = vpop.f32.mrb[0].mxu0
  %v1404 = vadd.f32 %v1294, %v1403
  %v1405 = vpop.f32.mrb[0].mxu0
  %v1406 = vadd.f32 %v1290, %v1405
  %v1407 = vpop.f32.mrb[0].mxu0
  %v1408 = vadd.f32 %v1294, %v1407
  %1409 = vmatprep.mubr.bf16.mxu0 0
  %1410 = vmatmul.mubr.bf16.gmra.mrb[0].mxu0 %v1359
  %v1411 = vpop.f32.mrb[0].mxu0
  %v1412 = vadd.f32 %v1290, %v1411
  %v1413 = vpop.f32.mrb[0].mxu0
  %v1414 = vadd.f32 %v1294, %v1413
  %v1415 = vpop.f32.mrb[0].mxu0
  %v1416 = vadd.f32 %v1290, %v1415
  %v1417 = vpop.f32.mrb[0].mxu0
  %v1418 = vadd.f32 %v1294, %v1417
  %1419 = vmatprep.mubr.bf16.mxu0 0
  %1420 = vmatmul.mubr.bf16.gmra.mrb[0].mxu0 %v1362
  %v1421 = vpop.f32.mrb[0].mxu0
  %v1422 = vadd.f32 %v1290, %v1421
  %v1423 = vpop.f32.mrb[0].mxu0
  %v1424 = vadd.f32 %v1294, %v1423
  %v1425 = vpop.f32.mrb[0].mxu0
  %v1426 = vadd.f32 %v1290, %v1425
  %v1427 = vpop.f32.mrb[0].mxu0
  %v1428 = vadd.f32 %v1294, %v1427
  %1429 = vmatprep.mubr.bf16.mxu0 0
  %1430 = vmatmul.mubr.bf16.gmra.mrb[0].mxu0 %v1365
  %v1431 = vpop.f32.mrb[0].mxu0
  %v1432 = vadd.f32 %v1290, %v1431
  %v1433 = vpop.f32.mrb[0].mxu0
  %v1434 = vadd.f32 %v1294, %v1433
  %v1435 = vpop.f32.mrb[0].mxu0
  %v1436 = vpop.f32.mrb[0].mxu0
  %1437 = vdwg.mxu0
  %1438 = vst [vmem:[#allocation3] sm:$0xff] %v1402
  %1439 = vst [vmem:[#allocation3 + $0x8] sm:$0xff] %v1404
  %1440 = vst [vmem:[#allocation3 + $0x10] sm:$0xff] %v1406
  %1441 = vst [vmem:[#allocation3 + $0x18] sm:$0xff] %v1408
  %1442 = vst [vmem:[#allocation3 + $0x20] sm:$0xff] %v1412
  %1443 = vst [vmem:[#allocation3 + $0x28] sm:$0xff] %v1414
  %1444 = vst [vmem:[#allocation3 + $0x30] sm:$0xff] %v1416
  %1445 = vst [vmem:[#allocation3 + $0x38] sm:$0xff] %v1418
  %1446 = vst [vmem:[#allocation3 + $0x40] sm:$0xff] %v1422
  %1447 = vst [vmem:[#allocation3 + $0x48] sm:$0xff] %v1424
  %1448 = vst [vmem:[#allocation3 + $0x50] sm:$0xff] %v1426
  %1449 = vst [vmem:[#allocation3 + $0x58] sm:$0xff] %v1428
  %1450 = vst [vmem:[#allocation3 + $0x60] sm:$0xff] %v1432
  %1451 = vst [vmem:[#allocation3 + $0x68] sm:$0xff] %v1434
  %s1452 = scalar_lea.vmem %s6, 8
  %v1453 = vld [vmem:[%s1452] sm:$0xff]
  %s1454 = scalar_lea.vmem %s7, 8
  %v1455 = vld [vmem:[%s1454] sm:$0xff]
  %v1456 = vld [vmem:[#allocation3] sm:$0xff]
  %v1457 = vld [vmem:[#allocation3 + $0x8] sm:$0xff]
  %v1458 = vpack.c.bf16 %v1453, %v1453
  %s1459 = scalar_lea.vmem %s4, 64
  %v1460 = vld [vmem:[%s1459] sm:$0xff]
  %v1461 = vld [vmem:[%s1459 + $0x8] sm:$0xff]
  %v1462 = vld [vmem:[%s1459 + $0x10] sm:$0xff]
  %v1463 = vld [vmem:[%s1459 + $0x18] sm:$0xff]
  %v1464 = vld [vmem:[%s1459 + $0x20] sm:$0xff]
  %v1465 = vld [vmem:[%s1459 + $0x28] sm:$0xff]
  %v1466 = vld [vmem:[%s1459 + $0x30] sm:$0xff]
  %v1467 = vld [vmem:[%s1459 + $0x38] sm:$0xff]
  %v1476 = vunpack.c.l.b16 %v1460
  %v1477 = vunpack.c.h.b16 %v1460
  %v1478 = vunpack.c.l.b16 %v1461
  %v1479 = vunpack.c.h.b16 %v1461
  %v1480 = vunpack.c.l.b16 %v1462
  %v1481 = vunpack.c.h.b16 %v1462
  %v1482 = vunpack.c.l.b16 %v1463
  %v1483 = vunpack.c.h.b16 %v1463
  %v1484 = vunpack.c.l.b16 %v1464
  %v1485 = vunpack.c.h.b16 %v1464
  %v1486 = vunpack.c.l.b16 %v1465
  %v1487 = vunpack.c.h.b16 %v1465
  %v1488 = vunpack.c.l.b16 %v1466
  %v1489 = vunpack.c.h.b16 %v1466
  %v1490 = vunpack.c.l.b16 %v1467
  %v1491 = vunpack.c.h.b16 %v1467
  %v1492 = vpack.c.b16 %v1478, %v1476
  %v1493 = vpack.c.b16 %v1479, %v1477
  %v1494 = vpack.c.b16 %v1482, %v1480
  %v1495 = vpack.c.b16 %v1483, %v1481
  %v1496 = vpack.c.b16 %v1486, %v1484
  %v1497 = vpack.c.b16 %v1487, %v1485
  %v1498 = vpack.c.b16 %v1490, %v1488
  %v1499 = vpack.c.b16 %v1491, %v1489
  %v1509 = vsel %vm257, %v1458, 0
  %1511 = vmatprep.subr.bf16.mxu0 %v1493
  %1512 = vmatpush1.bf16.msra.mxu0 %v1492
  %1513 = vmatprep.subr.bf16.mxu0 %v1495
  %1514 = vmatpush1.bf16.msra.mxu0 %v1494
  %1515 = vmatprep.subr.bf16.mxu0 %v1497
  %1516 = vmatpush1.bf16.msra.mxu0 %v1496
  %1517 = vmatprep.subr.bf16.mxu0 %v1499
  %1518 = vmatpush1.bf16.msra.mxu0 %v1498
  %1519 = vmatprep.subr.bf16.mxu0 0
  %1520 = vmatpush1.bf16.msra.mxu0 0
  %1521 = vmatprep.subr.bf16.mxu0 0
  %1522 = vmatpush1.bf16.msra.mxu0 0
  %1523 = vmatprep.subr.bf16.mxu0 0
  %1524 = vmatpush1.bf16.msra.mxu0 0
  %1525 = vmatprep.subr.bf16.mxu0 0
  %1526 = vmatpush1.bf16.msra.mxu0 0
  %1527 = vmatprep.subr.bf16.mxu0 0
  %1528 = vmatpush1.bf16.msra.mxu0 0
  %1529 = vmatprep.subr.bf16.mxu0 0
  %1530 = vmatpush1.bf16.msra.mxu0 0
  %1531 = vmatprep.subr.bf16.mxu0 0
  %1532 = vmatpush1.bf16.msra.mxu0 0
  %1533 = vmatprep.subr.bf16.mxu0 0
  %1534 = vmatpush1.bf16.msra.mxu0 0
  %1535 = vmatprep.subr.bf16.mxu0 0
  %1536 = vmatpush1.bf16.msra.mxu0 0
  %1537 = vmatprep.subr.bf16.mxu0 0
  %1538 = vmatpush1.bf16.msra.mxu0 0
  %1539 = vmatprep.subr.bf16.mxu0 0
  %1540 = vmatpush1.bf16.msra.mxu0 0
  %1541 = vmatprep.subr.bf16.mxu0 0
  %1542 = vmatpush1.bf16.msra.mxu0 0
  %1543 = vmatprep.mubr.bf16.mxu0 0
  %1544 = vmatmul.mubr.bf16.gmra.mrb[0].mxu0 %v1509
  %v1545 = vpop.f32.mrb[0].mxu0
  %v1546 = vadd.f32 0.0, %v1545
  %v1547 = vpop.f32.mrb[0].mxu0
  %v1548 = vadd.f32 0.0, %v1547
  %v1549 = vpop.f32.mrb[0].mxu0
  %v1550 = vpop.f32.mrb[0].mxu0
  %1551 = vdwg.mxu0
  %v1552 = vadd.f32 %v1456, %v1546
  %v1553 = vadd.f32 %v1457, %v1548
  %v1554 = vxor.u32 %v1552, 2147483648
  %v1555 = vmul.f32 %v1554, 1.442695
  %v1556 = vpow.pop %v1555
  %v1557 = vadd.f32 %v1556, 1.0
  %v1558 = vrcp.pop %v1557
  %v1559 = vmul.f32 1.0, %v1558
  %v1560 = vtanh.pop %v1553
  %v1561 = vxor.u32 %v1553, 2147483648
  %v1562 = vmul.f32 %v1561, 1.442695
  %v1563 = vpow.pop %v1562
  %v1564 = vadd.f32 %v1563, 1.0
  %v1565 = vrcp.pop %v1564
  %v1566 = vmul.f32 1.0, %v1565
  %1568 = vrot.lane.b32.xlu0 %v1455, 64
  %v1569 = vpop.permute.xlu0 %1568
  %v1571 = vmul.f32 %v1559, %v1569
  %v1572 = vmul.f32 %v1559, %v1560
  %1574 = vrot.lane.b32.xlu0 %v1572, 64
  %v1575 = vpop.permute.xlu0 %1574
  %v1577 = vadd.f32 %v1571, %v1575
  %v1578 = vtanh.pop %v1577
  %v1579 = vmul.f32 %v1566, %v1578
  %v1580 = vld [vmem:[%s488] sm:$0xff]
  %v1581 = vld [vmem:[%s488 + $0x8] sm:$0xff]
  %v1582 = vpack.c.bf16 %v1579, %v1579
  %1584 = vrot.lane.b32.xlu0 %v1582, 64
  %v1585 = vpop.permute.xlu0 %1584
  %v1587 = vsel %vm257, %v1585, 0
  %1589 = vmatprep.subr.bf16.mxu0 %v1493
  %1590 = vmatpush1.bf16.msra.mxu0 %v1492
  %1591 = vmatprep.subr.bf16.mxu0 %v1495
  %1592 = vmatpush1.bf16.msra.mxu0 %v1494
  %1593 = vmatprep.subr.bf16.mxu0 %v1497
  %1594 = vmatpush1.bf16.msra.mxu0 %v1496
  %1595 = vmatprep.subr.bf16.mxu0 %v1499
  %1596 = vmatpush1.bf16.msra.mxu0 %v1498
  %1597 = vmatprep.subr.bf16.mxu0 0
  %1598 = vmatpush1.bf16.msra.mxu0 0
  %1599 = vmatprep.subr.bf16.mxu0 0
  %1600 = vmatpush1.bf16.msra.mxu0 0
  %1601 = vmatprep.subr.bf16.mxu0 0
  %1602 = vmatpush1.bf16.msra.mxu0 0
  %1603 = vmatprep.subr.bf16.mxu0 0
  %1604 = vmatpush1.bf16.msra.mxu0 0
  %1605 = vmatprep.subr.bf16.mxu0 0
  %1606 = vmatpush1.bf16.msra.mxu0 0
  %1607 = vmatprep.subr.bf16.mxu0 0
  %1608 = vmatpush1.bf16.msra.mxu0 0
  %1609 = vmatprep.subr.bf16.mxu0 0
  %1610 = vmatpush1.bf16.msra.mxu0 0
  %1611 = vmatprep.subr.bf16.mxu0 0
  %1612 = vmatpush1.bf16.msra.mxu0 0
  %1613 = vmatprep.subr.bf16.mxu0 0
  %1614 = vmatpush1.bf16.msra.mxu0 0
  %1615 = vmatprep.subr.bf16.mxu0 0
  %1616 = vmatpush1.bf16.msra.mxu0 0
  %1617 = vmatprep.subr.bf16.mxu0 0
  %1618 = vmatpush1.bf16.msra.mxu0 0
  %1619 = vmatprep.subr.bf16.mxu0 0
  %1620 = vmatpush1.bf16.msra.mxu0 0
  %1621 = vmatprep.mubr.bf16.mxu0 0
  %1622 = vmatmul.mubr.bf16.gmra.mrb[0].mxu0 %v1587
  %v1623 = vpop.f32.mrb[0].mxu0
  %v1624 = vadd.f32 0.0, %v1623
  %v1625 = vpop.f32.mrb[0].mxu0
  %v1626 = vadd.f32 0.0, %v1625
  %v1627 = vpop.f32.mrb[0].mxu0
  %v1628 = vpop.f32.mrb[0].mxu0
  %1629 = vdwg.mxu0
  %v1630 = vadd.f32 %v1580, %v1624
  %v1631 = vadd.f32 %v1581, %v1626
  %v1632 = vxor.u32 %v1630, 2147483648
  %v1633 = vmul.f32 %v1632, 1.442695
  %v1634 = vpow.pop %v1633
  %v1635 = vadd.f32 %v1634, 1.0
  %v1636 = vrcp.pop %v1635
  %v1637 = vmul.f32 1.0, %v1636
  %v1638 = vtanh.pop %v1631
  %v1639 = vxor.u32 %v1631, 2147483648
  %v1640 = vmul.f32 %v1639, 1.442695
  %v1641 = vpow.pop %v1640
  %v1642 = vadd.f32 %v1641, 1.0
  %v1643 = vrcp.pop %v1642
  %v1644 = vmul.f32 1.0, %v1643
  %v1645 = vmul.f32 %v1637, %v1577
  %v1646 = vmul.f32 %v1637, %v1638
  %1648 = vrot.lane.b32.xlu0 %v1646, 64
  %v1649 = vpop.permute.xlu0 %1648
  %v1651 = vadd.f32 %v1645, %v1649
  %v1652 = vtanh.pop %v1651
  %v1653 = vmul.f32 %v1644, %v1652
  %v1654 = vld [vmem:[%s618] sm:$0xff]
  %v1655 = vld [vmem:[%s618 + $0x8] sm:$0xff]
  %v1656 = vpack.c.bf16 %v1653, %v1653
  %1658 = vrot.lane.b32.xlu0 %v1656, 64
  %v1659 = vpop.permute.xlu0 %1658
  %v1661 = vsel %vm257, %v1659, 0
  %1663 = vmatprep.subr.bf16.mxu0 %v1493
  %1664 = vmatpush1.bf16.msra.mxu0 %v1492
  %1665 = vmatprep.subr.bf16.mxu0 %v1495
  %1666 = vmatpush1.bf16.msra.mxu0 %v1494
  %1667 = vmatprep.subr.bf16.mxu0 %v1497
  %1668 = vmatpush1.bf16.msra.mxu0 %v1496
  %1669 = vmatprep.subr.bf16.mxu0 %v1499
  %1670 = vmatpush1.bf16.msra.mxu0 %v1498
  %1671 = vmatprep.subr.bf16.mxu0 0
  %1672 = vmatpush1.bf16.msra.mxu0 0
  %1673 = vmatprep.subr.bf16.mxu0 0
  %1674 = vmatpush1.bf16.msra.mxu0 0
  %1675 = vmatprep.subr.bf16.mxu0 0
  %1676 = vmatpush1.bf16.msra.mxu0 0
  %1677 = vmatprep.subr.bf16.mxu0 0
  %1678 = vmatpush1.bf16.msra.mxu0 0
  %1679 = vmatprep.subr.bf16.mxu0 0
  %1680 = vmatpush1.bf16.msra.mxu0 0
  %1681 = vmatprep.subr.bf16.mxu0 0
  %1682 = vmatpush1.bf16.msra.mxu0 0
  %1683 = vmatprep.subr.bf16.mxu0 0
  %1684 = vmatpush1.bf16.msra.mxu0 0
  %1685 = vmatprep.subr.bf16.mxu0 0
  %1686 = vmatpush1.bf16.msra.mxu0 0
  %1687 = vmatprep.subr.bf16.mxu0 0
  %1688 = vmatpush1.bf16.msra.mxu0 0
  %1689 = vmatprep.subr.bf16.mxu0 0
  %1690 = vmatpush1.bf16.msra.mxu0 0
  %1691 = vmatprep.subr.bf16.mxu0 0
  %1692 = vmatpush1.bf16.msra.mxu0 0
  %1693 = vmatprep.subr.bf16.mxu0 0
  %1694 = vmatpush1.bf16.msra.mxu0 0
  %1695 = vmatprep.mubr.bf16.mxu0 0
  %1696 = vmatmul.mubr.bf16.gmra.mrb[0].mxu0 %v1661
  %v1697 = vpop.f32.mrb[0].mxu0
  %v1698 = vadd.f32 0.0, %v1697
  %v1699 = vpop.f32.mrb[0].mxu0
  %v1700 = vadd.f32 0.0, %v1699
  %v1701 = vpop.f32.mrb[0].mxu0
  %v1702 = vpop.f32.mrb[0].mxu0
  %1703 = vdwg.mxu0
  %v1704 = vadd.f32 %v1654, %v1698
  %v1705 = vadd.f32 %v1655, %v1700
  %v1706 = vxor.u32 %v1704, 2147483648
  %v1707 = vmul.f32 %v1706, 1.442695
  %v1708 = vpow.pop %v1707
  %v1709 = vadd.f32 %v1708, 1.0
  %v1710 = vrcp.pop %v1709
  %v1711 = vmul.f32 1.0, %v1710
  %v1712 = vtanh.pop %v1705
  %v1713 = vxor.u32 %v1705, 2147483648
  %v1714 = vmul.f32 %v1713, 1.442695
  %v1715 = vpow.pop %v1714
  %v1716 = vadd.f32 %v1715, 1.0
  %v1717 = vrcp.pop %v1716
  %v1718 = vmul.f32 1.0, %v1717
  %v1719 = vmul.f32 %v1711, %v1651
  %v1720 = vmul.f32 %v1711, %v1712
  %1722 = vrot.lane.b32.xlu0 %v1720, 64
  %v1723 = vpop.permute.xlu0 %1722
  %v1725 = vadd.f32 %v1719, %v1723
  %v1726 = vtanh.pop %v1725
  %v1727 = vmul.f32 %v1718, %v1726
  %v1728 = vld [vmem:[%s748] sm:$0xff]
  %v1729 = vld [vmem:[%s748 + $0x8] sm:$0xff]
  %v1730 = vpack.c.bf16 %v1727, %v1727
  %1732 = vrot.lane.b32.xlu0 %v1730, 64
  %v1733 = vpop.permute.xlu0 %1732
  %v1735 = vsel %vm257, %v1733, 0
  %1737 = vmatprep.subr.bf16.mxu0 %v1493
  %1738 = vmatpush1.bf16.msra.mxu0 %v1492
  %1739 = vmatprep.subr.bf16.mxu0 %v1495
  %1740 = vmatpush1.bf16.msra.mxu0 %v1494
  %1741 = vmatprep.subr.bf16.mxu0 %v1497
  %1742 = vmatpush1.bf16.msra.mxu0 %v1496
  %1743 = vmatprep.subr.bf16.mxu0 %v1499
  %1744 = vmatpush1.bf16.msra.mxu0 %v1498
  %1745 = vmatprep.subr.bf16.mxu0 0
  %1746 = vmatpush1.bf16.msra.mxu0 0
  %1747 = vmatprep.subr.bf16.mxu0 0
  %1748 = vmatpush1.bf16.msra.mxu0 0
  %1749 = vmatprep.subr.bf16.mxu0 0
  %1750 = vmatpush1.bf16.msra.mxu0 0
  %1751 = vmatprep.subr.bf16.mxu0 0
  %1752 = vmatpush1.bf16.msra.mxu0 0
  %1753 = vmatprep.subr.bf16.mxu0 0
  %1754 = vmatpush1.bf16.msra.mxu0 0
  %1755 = vmatprep.subr.bf16.mxu0 0
  %1756 = vmatpush1.bf16.msra.mxu0 0
  %1757 = vmatprep.subr.bf16.mxu0 0
  %1758 = vmatpush1.bf16.msra.mxu0 0
  %1759 = vmatprep.subr.bf16.mxu0 0
  %1760 = vmatpush1.bf16.msra.mxu0 0
  %1761 = vmatprep.subr.bf16.mxu0 0
  %1762 = vmatpush1.bf16.msra.mxu0 0
  %1763 = vmatprep.subr.bf16.mxu0 0
  %1764 = vmatpush1.bf16.msra.mxu0 0
  %1765 = vmatprep.subr.bf16.mxu0 0
  %1766 = vmatpush1.bf16.msra.mxu0 0
  %1767 = vmatprep.subr.bf16.mxu0 0
  %1768 = vmatpush1.bf16.msra.mxu0 0
  %1769 = vmatprep.mubr.bf16.mxu0 0
  %1770 = vmatmul.mubr.bf16.gmra.mrb[0].mxu0 %v1735
  %v1771 = vpop.f32.mrb[0].mxu0
  %v1772 = vadd.f32 0.0, %v1771
  %v1773 = vpop.f32.mrb[0].mxu0
  %v1774 = vadd.f32 0.0, %v1773
  %v1775 = vpop.f32.mrb[0].mxu0
  %v1776 = vpop.f32.mrb[0].mxu0
  %1777 = vdwg.mxu0
  %v1778 = vadd.f32 %v1728, %v1772
  %v1779 = vadd.f32 %v1729, %v1774
  %v1780 = vxor.u32 %v1778, 2147483648
  %v1781 = vmul.f32 %v1780, 1.442695
  %v1782 = vpow.pop %v1781
  %v1783 = vadd.f32 %v1782, 1.0
  %v1784 = vrcp.pop %v1783
  %v1785 = vmul.f32 1.0, %v1784
  %v1786 = vtanh.pop %v1779
  %v1787 = vxor.u32 %v1779, 2147483648
  %v1788 = vmul.f32 %v1787, 1.442695
  %v1789 = vpow.pop %v1788
  %v1790 = vadd.f32 %v1789, 1.0
  %v1791 = vrcp.pop %v1790
  %v1792 = vmul.f32 1.0, %v1791
  %v1793 = vmul.f32 %v1785, %v1725
  %v1794 = vmul.f32 %v1785, %v1786
  %1796 = vrot.lane.b32.xlu0 %v1794, 64
  %v1797 = vpop.permute.xlu0 %1796
  %v1799 = vadd.f32 %v1793, %v1797
  %v1800 = vtanh.pop %v1799
  %v1801 = vmul.f32 %v1792, %v1800
  %v1802 = vld [vmem:[%s878] sm:$0xff]
  %v1803 = vld [vmem:[%s878 + $0x8] sm:$0xff]
  %v1804 = vpack.c.bf16 %v1801, %v1801
  %1806 = vrot.lane.b32.xlu0 %v1804, 64
  %v1807 = vpop.permute.xlu0 %1806
  %v1809 = vsel %vm257, %v1807, 0
  %1811 = vmatprep.subr.bf16.mxu0 %v1493
  %1812 = vmatpush1.bf16.msra.mxu0 %v1492
  %1813 = vmatprep.subr.bf16.mxu0 %v1495
  %1814 = vmatpush1.bf16.msra.mxu0 %v1494
  %1815 = vmatprep.subr.bf16.mxu0 %v1497
  %1816 = vmatpush1.bf16.msra.mxu0 %v1496
  %1817 = vmatprep.subr.bf16.mxu0 %v1499
  %1818 = vmatpush1.bf16.msra.mxu0 %v1498
  %1819 = vmatprep.subr.bf16.mxu0 0
  %1820 = vmatpush1.bf16.msra.mxu0 0
  %1821 = vmatprep.subr.bf16.mxu0 0
  %1822 = vmatpush1.bf16.msra.mxu0 0
  %1823 = vmatprep.subr.bf16.mxu0 0
  %1824 = vmatpush1.bf16.msra.mxu0 0
  %1825 = vmatprep.subr.bf16.mxu0 0
  %1826 = vmatpush1.bf16.msra.mxu0 0
  %1827 = vmatprep.subr.bf16.mxu0 0
  %1828 = vmatpush1.bf16.msra.mxu0 0
  %1829 = vmatprep.subr.bf16.mxu0 0
  %1830 = vmatpush1.bf16.msra.mxu0 0
  %1831 = vmatprep.subr.bf16.mxu0 0
  %1832 = vmatpush1.bf16.msra.mxu0 0
  %1833 = vmatprep.subr.bf16.mxu0 0
  %1834 = vmatpush1.bf16.msra.mxu0 0
  %1835 = vmatprep.subr.bf16.mxu0 0
  %1836 = vmatpush1.bf16.msra.mxu0 0
  %1837 = vmatprep.subr.bf16.mxu0 0
  %1838 = vmatpush1.bf16.msra.mxu0 0
  %1839 = vmatprep.subr.bf16.mxu0 0
  %1840 = vmatpush1.bf16.msra.mxu0 0
  %1841 = vmatprep.subr.bf16.mxu0 0
  %1842 = vmatpush1.bf16.msra.mxu0 0
  %1843 = vmatprep.mubr.bf16.mxu0 0
  %1844 = vmatmul.mubr.bf16.gmra.mrb[0].mxu0 %v1809
  %v1845 = vpop.f32.mrb[0].mxu0
  %v1846 = vadd.f32 0.0, %v1845
  %v1847 = vpop.f32.mrb[0].mxu0
  %v1848 = vadd.f32 0.0, %v1847
  %v1849 = vpop.f32.mrb[0].mxu0
  %v1850 = vpop.f32.mrb[0].mxu0
  %1851 = vdwg.mxu0
  %v1852 = vadd.f32 %v1802, %v1846
  %v1853 = vadd.f32 %v1803, %v1848
  %v1854 = vxor.u32 %v1852, 2147483648
  %v1855 = vmul.f32 %v1854, 1.442695
  %v1856 = vpow.pop %v1855
  %v1857 = vadd.f32 %v1856, 1.0
  %v1858 = vrcp.pop %v1857
  %v1859 = vmul.f32 1.0, %v1858
  %v1860 = vtanh.pop %v1853
  %v1861 = vxor.u32 %v1853, 2147483648
  %v1862 = vmul.f32 %v1861, 1.442695
  %v1863 = vpow.pop %v1862
  %v1864 = vadd.f32 %v1863, 1.0
  %v1865 = vrcp.pop %v1864
  %v1866 = vmul.f32 1.0, %v1865
  %v1867 = vmul.f32 %v1859, %v1799
  %v1868 = vmul.f32 %v1859, %v1860
  %1870 = vrot.lane.b32.xlu0 %v1868, 64
  %v1871 = vpop.permute.xlu0 %1870
  %v1873 = vadd.f32 %v1867, %v1871
  %v1874 = vtanh.pop %v1873
  %v1875 = vmul.f32 %v1866, %v1874
  %v1876 = vld [vmem:[%s1008] sm:$0xff]
  %v1877 = vld [vmem:[%s1008 + $0x8] sm:$0xff]
  %v1878 = vpack.c.bf16 %v1875, %v1875
  %1880 = vrot.lane.b32.xlu0 %v1878, 64
  %v1881 = vpop.permute.xlu0 %1880
  %v1883 = vsel %vm257, %v1881, 0
  %1885 = vmatprep.subr.bf16.mxu0 %v1493
  %1886 = vmatpush1.bf16.msra.mxu0 %v1492
  %1887 = vmatprep.subr.bf16.mxu0 %v1495
  %1888 = vmatpush1.bf16.msra.mxu0 %v1494
  %1889 = vmatprep.subr.bf16.mxu0 %v1497
  %1890 = vmatpush1.bf16.msra.mxu0 %v1496
  %1891 = vmatprep.subr.bf16.mxu0 %v1499
  %1892 = vmatpush1.bf16.msra.mxu0 %v1498
  %1893 = vmatprep.subr.bf16.mxu0 0
  %1894 = vmatpush1.bf16.msra.mxu0 0
  %1895 = vmatprep.subr.bf16.mxu0 0
  %1896 = vmatpush1.bf16.msra.mxu0 0
  %1897 = vmatprep.subr.bf16.mxu0 0
  %1898 = vmatpush1.bf16.msra.mxu0 0
  %1899 = vmatprep.subr.bf16.mxu0 0
  %1900 = vmatpush1.bf16.msra.mxu0 0
  %1901 = vmatprep.subr.bf16.mxu0 0
  %1902 = vmatpush1.bf16.msra.mxu0 0
  %1903 = vmatprep.subr.bf16.mxu0 0
  %1904 = vmatpush1.bf16.msra.mxu0 0
  %1905 = vmatprep.subr.bf16.mxu0 0
  %1906 = vmatpush1.bf16.msra.mxu0 0
  %1907 = vmatprep.subr.bf16.mxu0 0
  %1908 = vmatpush1.bf16.msra.mxu0 0
  %1909 = vmatprep.subr.bf16.mxu0 0
  %1910 = vmatpush1.bf16.msra.mxu0 0
  %1911 = vmatprep.subr.bf16.mxu0 0
  %1912 = vmatpush1.bf16.msra.mxu0 0
  %1913 = vmatprep.subr.bf16.mxu0 0
  %1914 = vmatpush1.bf16.msra.mxu0 0
  %1915 = vmatprep.subr.bf16.mxu0 0
  %1916 = vmatpush1.bf16.msra.mxu0 0
  %1917 = vmatprep.mubr.bf16.mxu0 0
  %1918 = vmatmul.mubr.bf16.gmra.mrb[0].mxu0 %v1883
  %v1919 = vpop.f32.mrb[0].mxu0
  %v1920 = vadd.f32 0.0, %v1919
  %v1921 = vpop.f32.mrb[0].mxu0
  %v1922 = vadd.f32 0.0, %v1921
  %v1923 = vpop.f32.mrb[0].mxu0
  %v1924 = vpop.f32.mrb[0].mxu0
  %1925 = vdwg.mxu0
  %v1926 = vadd.f32 %v1876, %v1920
  %v1927 = vadd.f32 %v1877, %v1922
  %v1928 = vxor.u32 %v1926, 2147483648
  %v1929 = vmul.f32 %v1928, 1.442695
  %v1930 = vpow.pop %v1929
  %v1931 = vadd.f32 %v1930, 1.0
  %v1932 = vrcp.pop %v1931
  %v1933 = vmul.f32 1.0, %v1932
  %v1934 = vtanh.pop %v1927
  %v1935 = vxor.u32 %v1927, 2147483648
  %v1936 = vmul.f32 %v1935, 1.442695
  %v1937 = vpow.pop %v1936
  %v1938 = vadd.f32 %v1937, 1.0
  %v1939 = vrcp.pop %v1938
  %v1940 = vmul.f32 1.0, %v1939
  %v1941 = vmul.f32 %v1933, %v1873
  %v1942 = vmul.f32 %v1933, %v1934
  %1944 = vrot.lane.b32.xlu0 %v1942, 64
  %v1945 = vpop.permute.xlu0 %1944
  %v1947 = vadd.f32 %v1941, %v1945
  %v1948 = vtanh.pop %v1947
  %v1949 = vmul.f32 %v1940, %v1948
  %v1950 = vld [vmem:[%s1138] sm:$0xff]
  %v1951 = vld [vmem:[%s1138 + $0x8] sm:$0xff]
  %v1952 = vpack.c.bf16 %v1949, %v1949
  %1954 = vrot.lane.b32.xlu0 %v1952, 64
  %v1955 = vpop.permute.xlu0 %1954
  %v1957 = vsel %vm257, %v1955, 0
  %1959 = vmatprep.subr.bf16.mxu0 %v1493
  %1960 = vmatpush1.bf16.msra.mxu0 %v1492
  %1961 = vmatprep.subr.bf16.mxu0 %v1495
  %1962 = vmatpush1.bf16.msra.mxu0 %v1494
  %1963 = vmatprep.subr.bf16.mxu0 %v1497
  %1964 = vmatpush1.bf16.msra.mxu0 %v1496
  %1965 = vmatprep.subr.bf16.mxu0 %v1499
  %1966 = vmatpush1.bf16.msra.mxu0 %v1498
  %1967 = vmatprep.subr.bf16.mxu0 0
  %1968 = vmatpush1.bf16.msra.mxu0 0
  %1969 = vmatprep.subr.bf16.mxu0 0
  %1970 = vmatpush1.bf16.msra.mxu0 0
  %1971 = vmatprep.subr.bf16.mxu0 0
  %1972 = vmatpush1.bf16.msra.mxu0 0
  %1973 = vmatprep.subr.bf16.mxu0 0
  %1974 = vmatpush1.bf16.msra.mxu0 0
  %1975 = vmatprep.subr.bf16.mxu0 0
  %1976 = vmatpush1.bf16.msra.mxu0 0
  %1977 = vmatprep.subr.bf16.mxu0 0
  %1978 = vmatpush1.bf16.msra.mxu0 0
  %1979 = vmatprep.subr.bf16.mxu0 0
  %1980 = vmatpush1.bf16.msra.mxu0 0
  %1981 = vmatprep.subr.bf16.mxu0 0
  %1982 = vmatpush1.bf16.msra.mxu0 0
  %1983 = vmatprep.subr.bf16.mxu0 0
  %1984 = vmatpush1.bf16.msra.mxu0 0
  %1985 = vmatprep.subr.bf16.mxu0 0
  %1986 = vmatpush1.bf16.msra.mxu0 0
  %1987 = vmatprep.subr.bf16.mxu0 0
  %1988 = vmatpush1.bf16.msra.mxu0 0
  %1989 = vmatprep.subr.bf16.mxu0 0
  %1990 = vmatpush1.bf16.msra.mxu0 0
  %1991 = vmatprep.mubr.bf16.mxu0 0
  %1992 = vmatmul.mubr.bf16.gmra.mrb[0].mxu0 %v1957
  %v1993 = vpop.f32.mrb[0].mxu0
  %v1994 = vadd.f32 0.0, %v1993
  %v1995 = vpop.f32.mrb[0].mxu0
  %v1996 = vadd.f32 0.0, %v1995
  %v1997 = vpop.f32.mrb[0].mxu0
  %v1998 = vpop.f32.mrb[0].mxu0
  %1999 = vdwg.mxu0
  %v2000 = vadd.f32 %v1950, %v1994
  %v2001 = vadd.f32 %v1951, %v1996
  %v2002 = vxor.u32 %v2000, 2147483648
  %v2003 = vmul.f32 %v2002, 1.442695
  %v2004 = vpow.pop %v2003
  %v2005 = vadd.f32 %v2004, 1.0
  %v2006 = vrcp.pop %v2005
  %v2007 = vmul.f32 1.0, %v2006
  %v2008 = vtanh.pop %v2001
  %v2009 = vxor.u32 %v2001, 2147483648
  %v2010 = vmul.f32 %v2009, 1.442695
  %v2011 = vpow.pop %v2010
  %v2012 = vadd.f32 %v2011, 1.0
  %v2013 = vrcp.pop %v2012
  %v2014 = vmul.f32 1.0, %v2013
  %v2015 = vmul.f32 %v2007, %v1947
  %v2016 = vmul.f32 %v2007, %v2008
  %2018 = vrot.lane.b32.xlu0 %v2016, 64
  %v2019 = vpop.permute.xlu0 %2018
  %v2021 = vadd.f32 %v2015, %v2019
  %v2022 = vtanh.pop %v2021
  %v2023 = vmul.f32 %v2014, %v2022
  %v2024 = vpack.c.bf16 %v2023, %v2023
  %v2025 = vld [vmem:[%s8] sm:$0xf]
  %v2026 = vld [vmem:[%s8 + $0x4] sm:$0xf]
  %v2027 = vld [vmem:[%s8 + $0x8] sm:$0xf]
  %v2028 = vld [vmem:[%s8 + $0xc] sm:$0xf]
  %v2029 = vld [vmem:[%s8 + $0x10] sm:$0xf]
  %v2030 = vld [vmem:[%s8 + $0x14] sm:$0xf]
  %v2031 = vld [vmem:[%s8 + $0x18] sm:$0xf]
  %v2032 = vld [vmem:[%s8 + $0x1c] sm:$0xf]
  %v2033 = vld [vmem:[%s9] sm:$0x1]
  %v2035 = vlaneseq
  %v2036 = vshrl.u32 %v2035, 7
  %v2037 = vsub.s32 0, %v2036
  %v2038 = vrot.slane %v2033, %v2037
  %2041 = vrot.lane.b32.xlu0 %v2024, 64
  %v2042 = vpop.permute.xlu0 %2041
  %v2051 = vunpack.c.l.b16 %v2025
  %v2052 = vunpack.c.l.b16 %v2026
  %v2053 = vunpack.c.l.b16 %v2027
  %v2054 = vunpack.c.l.b16 %v2028
  %v2055 = vunpack.c.l.b16 %v2029
  %v2056 = vunpack.c.l.b16 %v2030
  %v2057 = vunpack.c.l.b16 %v2031
  %v2058 = vunpack.c.l.b16 %v2032
  %v2059 = vpack.c.b16 %v2052, %v2051
  %v2060 = vpack.c.b16 %v2054, %v2053
  %v2061 = vpack.c.b16 %v2056, %v2055
  %v2062 = vpack.c.b16 %v2058, %v2057
  %v2068 = vsel %vm257, %v2042, 0
  %2070 = vmatprep.subr.bf16.mxu0 0
  %2071 = vmatpush1.bf16.msra.mxu0 %v2059
  %2072 = vmatprep.subr.bf16.mxu0 0
  %2073 = vmatpush1.bf16.msra.mxu0 %v2060
  %2074 = vmatprep.subr.bf16.mxu0 0
  %2075 = vmatpush1.bf16.msra.mxu0 %v2061
  %2076 = vmatprep.subr.bf16.mxu0 0
  %2077 = vmatpush1.bf16.msra.mxu0 %v2062
  %2078 = vmatprep.subr.bf16.mxu0 0
  %2079 = vmatpush1.bf16.msra.mxu0 0
  %2080 = vmatprep.subr.bf16.mxu0 0
  %2081 = vmatpush1.bf16.msra.mxu0 0
  %2082 = vmatprep.subr.bf16.mxu0 0
  %2083 = vmatpush1.bf16.msra.mxu0 0
  %2084 = vmatprep.subr.bf16.mxu0 0
  %2085 = vmatpush1.bf16.msra.mxu0 0
  %2086 = vmatprep.subr.bf16.mxu0 0
  %2087 = vmatpush1.bf16.msra.mxu0 0
  %2088 = vmatprep.subr.bf16.mxu0 0
  %2089 = vmatpush1.bf16.msra.mxu0 0
  %2090 = vmatprep.subr.bf16.mxu0 0
  %2091 = vmatpush1.bf16.msra.mxu0 0
  %2092 = vmatprep.subr.bf16.mxu0 0
  %2093 = vmatpush1.bf16.msra.mxu0 0
  %2094 = vmatprep.subr.bf16.mxu0 0
  %2095 = vmatpush1.bf16.msra.mxu0 0
  %2096 = vmatprep.subr.bf16.mxu0 0
  %2097 = vmatpush1.bf16.msra.mxu0 0
  %2098 = vmatprep.subr.bf16.mxu0 0
  %2099 = vmatpush1.bf16.msra.mxu0 0
  %2100 = vmatprep.subr.bf16.mxu0 0
  %2101 = vmatpush1.bf16.msra.mxu0 0
  %2102 = vmatprep.mubr.bf16.mxu0 0
  %2103 = vmatmul.mubr.bf16.gmra.mrb[0].mxu0 %v2068
  %v2104 = vpop.f32.mrb[0].mxu0
  %v2105 = vadd.f32 %v2038, %v2104
  %v2106 = vpop.f32.mrb[0].mxu0
  %v2107 = vpop.f32.mrb[0].mxu0
  %v2108 = vpop.f32.mrb[0].mxu0
  %2109 = vdwg.mxu0
  %2110 = vst [vmem:[%s10] sm:$0xff] %v2105
  // Predicated region
  $region42: #{convnet_forward.1} parent=0 // pred_check
    _
  $region43: #{convnet_forward.1} parent=0 // pred_check_branch
    %2112 = sbr.rel (0) target = $region45
  $region44: #{convnet_forward.1} parent=0 // pred_region
    _
  $region45: #{convnet_forward.1} parent=0 // pred_fallthru
    _
  // Predicated region
  $region46: #{convnet_forward.1} parent=0 // pred_check
    _
  $region47: #{convnet_forward.1} parent=0 // pred_check_branch
    %2114 = sbr.rel (0) target = $region49
  $region48: #{convnet_forward.1} parent=0 // pred_region
    _
  $region49: #{convnet_forward.1} parent=0 // pred_fallthru
    _

</llo_original>
